<compile_context>
chip_gen: v7x
topology: tpu7x:2x2x1
jax: 0.10.0
libtpu: 0.0.40
codegen_flags: <defaults>
</compile_context>

<pallas_src>
import jax
import jax.numpy as jnp
from jax import lax
from jax.experimental import pallas as pl
from jax.experimental.pallas import tpu as pltpu

# ---------------------------------------------------------------------------
# Model hyper-parameters (small, synthetic encoder standing in for RoBERTa)
# ---------------------------------------------------------------------------
B, S, D = 2, 16, 32          # batch, sequence, hidden
H, DH = 4, 8                 # heads, head dim
INTER = 64                   # FFN intermediate size
VOCAB = 100
MAX_POS = 20
LN_EPS = 1e-5

_NT_DIMS = (((1,), (1,)), ((), ()))   # contract last dims: q @ k^T without an explicit transpose


def _layernorm(x, g, b, eps=LN_EPS):
    mu = jnp.mean(x, axis=-1, keepdims=True)
    xc = x - mu
    var = jnp.mean(xc * xc, axis=-1, keepdims=True)
    return xc * lax.rsqrt(var + eps) * g + b


def _mm(x, w):
    """MXU matmul with bf16 operands, f32 accumulation."""
    return jnp.dot(x.astype(jnp.bfloat16), w.astype(jnp.bfloat16),
                   preferred_element_type=jnp.float32)


# ---------------------------------------------------------------------------
# Single fused kernel: one grid step == one batch element (parallel over batch)
# ---------------------------------------------------------------------------
def fused_gcb_forward_kernel(
    nodes_ref, token_ref, attn_ref, emb_ref, posemb_ref,     # per-batch data
    embg_ref, embb_ref,                                       # embedding LayerNorm
    wqkv_ref, bqkv_ref,                                       # fused QKV projection
    wo_ref, bo_ref,                                           # attention output projection
    ln1g_ref, ln1b_ref,                                       # post-attention LayerNorm
    w1_ref, b1_ref, w2_ref, b2_ref,                           # FFN
    ln2g_ref, ln2b_ref,                                       # post-FFN LayerNorm
    wp_ref, bp_ref,                                           # pooler
    out_ref,
):
    f32 = jnp.float32
    bf16 = jnp.bfloat16

    nodes = nodes_ref[0]      # [S, 1]  float {0,1}  (position_idx == 0)
    tokens = token_ref[0]     # [1, S]  float {0,1}  (position_idx >= 2)
    attn = attn_ref[0]        # [S, S]  float {0,1}
    emb = emb_ref[0]          # [S, D]  gathered word embeddings

    # ---- graph-guided node->token aggregation (the explicit forward math) ----
    ntm = nodes * tokens * attn                                  # nodes[:,None] & token[None,:] & mask
    denom = jnp.sum(ntm, axis=-1, keepdims=True) + 1e-10
    norm = ntm * pl.reciprocal(denom, approx=True)
    avg = _mm(norm, emb)                                         # einsum('abc,acd->abd') per batch
    mixed = emb * (1.0 - nodes) + avg * nodes

    # ---- embeddings: inputs_embeds + position embeddings -> LayerNorm ----
    h = _layernorm(mixed + posemb_ref[0], embg_ref[...], embb_ref[...])
    # TODO(synk): dropout omitted (eval-mode semantics)

    # extended additive attention mask (3-D mask path of HF get_extended_attention_mask)
    ext = (1.0 - attn) * (-10000.0)                              # [S, S]

    # ---- self-attention with fused QKV projection ----
    qkv = _mm(h, wqkv_ref[...]) + bqkv_ref[...]                  # [S, 3D]
    q = qkv[:, 0 * D:1 * D]
    k = qkv[:, 1 * D:2 * D]
    v = qkv[:, 2 * D:3 * D]

    scale = 1.0 / (DH ** 0.5)
    ctx_heads = []
    for hh in range(H):                                          # static loop, heads stay in VMEM
        sl = slice(hh * DH, (hh + 1) * DH)
        qh = q[:, sl].astype(bf16)
        kh = k[:, sl].astype(bf16)
        vh = v[:, sl].astype(bf16)
        s = lax.dot_general(qh, kh, _NT_DIMS, preferred_element_type=f32)   # [S, S]
        s = s * scale + ext
        s = s - jnp.max(s, axis=-1, keepdims=True)
        p = jnp.exp(s)
        p = p * pl.reciprocal(jnp.sum(p, axis=-1, keepdims=True), approx=True)
        ctx_heads.append(jnp.dot(p.astype(bf16), vh, preferred_element_type=f32))
    ctx = jnp.concatenate(ctx_heads, axis=-1)                    # [S, D]

    attn_out = _mm(ctx, wo_ref[...]) + bo_ref[...]
    h = _layernorm(h + attn_out, ln1g_ref[...], ln1b_ref[...])

    # ---- feed-forward ----
    inter = _mm(h, w1_ref[...]) + b1_ref[...]
    # TODO(synk): HF RoBERTa uses exact (erf) GELU; tanh-approximate GELU kept for robust Mosaic lowering.
    inter = jax.nn.gelu(inter)
    ffn = _mm(inter, w2_ref[...]) + b2_ref[...]
    h = _layernorm(h + ffn, ln2g_ref[...], ln2b_ref[...])

    # ---- pooler: tanh(dense(h[:, 0, :])) ----
    pooled = jnp.tanh(_mm(h[0:1, :], wp_ref[...]) + bp_ref[...])  # [1, D]
    out_ref[0] = pooled


# ---------------------------------------------------------------------------
# Deterministic parameter init (synthetic encoder, RoBERTa-like, 1 layer)
# ---------------------------------------------------------------------------
def init_params(key):
    keys = jax.random.split(key, 10)
    init = lambda k, shape: (0.02 * jax.random.normal(k, shape)).astype(jnp.float32)
    zeros = lambda shape: jnp.zeros(shape, jnp.float32)
    ones = lambda shape: jnp.ones(shape, jnp.float32)
    wq, wk, wv = (init(keys[i], (D, D)) for i in (2, 3, 4))
    return {
        "word_emb": init(keys[0], (VOCAB, D)),
        "pos_emb": init(keys[1], (MAX_POS, D)),
        "emb_ln_g": ones((1, D)), "emb_ln_b": zeros((1, D)),
        "wqkv": jnp.concatenate([wq, wk, wv], axis=1),   # fused QKV weight [D, 3D]
        "bqkv": zeros((1, 3 * D)),
        "wo": init(keys[5], (D, D)), "bo": zeros((1, D)),
        "ln1_g": ones((1, D)), "ln1_b": zeros((1, D)),
        "w1": init(keys[6], (D, INTER)), "b1": zeros((1, INTER)),
        "w2": init(keys[7], (INTER, D)), "b2": zeros((1, D)),
        "ln2_g": ones((1, D)), "ln2_b": zeros((1, D)),
        "wp": init(keys[8], (D, D)), "bp": zeros((1, D)),  # pooler
    }


# ---------------------------------------------------------------------------
# Discriminator_gcb.forward (code_inputs branch): one pallas_call for everything
# ---------------------------------------------------------------------------
def discriminator_gcb_forward(params, code_inputs, attn_mask, position_idx):
    # TODO(synk): tokenizer-based convert()/pad_list (host-side string ops) have no
    # device/Pallas equivalent; forward implemented for convert=False.
    b, s = code_inputs.shape
    d = D

    nodes_col = (position_idx == 0).astype(jnp.float32)[:, :, None]   # [B,S,1]
    token_row = (position_idx >= 2).astype(jnp.float32)[:, None, :]   # [B,1,S]
    attn_f = attn_mask.astype(jnp.float32)                            # [B,S,S]

    # embedding-table gathers stay in plain JAX (glue)
    inputs_emb = jnp.take(params["word_emb"], code_inputs, axis=0)    # [B,S,D]
    pos_emb = jnp.take(params["pos_emb"], position_idx, axis=0)       # [B,S,D]

    def shared(shape):
        return pl.BlockSpec(shape, lambda i: (0,) * len(shape))

    def per_batch(s1, s2):
        return pl.BlockSpec((1, s1, s2), lambda i: (i, 0, 0))

    pooled = pl.pallas_call(
        fused_gcb_forward_kernel,
        out_shape=jax.ShapeDtypeStruct((b, 1, d), jnp.float32),
        grid=(b,),
        in_specs=[
            per_batch(s, 1),        # nodes mask column
            per_batch(1, s),        # token mask row
            per_batch(s, s),        # attention mask
            per_batch(s, d),        # gathered word embeddings
            per_batch(s, d),        # gathered position embeddings
            shared((1, d)), shared((1, d)),             # embedding LayerNorm g/b
            shared((d, 3 * d)), shared((1, 3 * d)),     # fused QKV w/b
            shared((d, d)), shared((1, d)),             # attention out proj w/b
            shared((1, d)), shared((1, d)),             # LN1 g/b
            shared((d, INTER)), shared((1, INTER)),     # FFN in w/b
            shared((INTER, d)), shared((1, d)),         # FFN out w/b
            shared((1, d)), shared((1, d)),             # LN2 g/b
            shared((d, d)), shared((1, d)),             # pooler w/b
        ],
        out_specs=pl.BlockSpec((1, 1, d), lambda i: (i, 0, 0)),
        compiler_params=pltpu.CompilerParams(dimension_semantics=("parallel",)),
    )(
        nodes_col, token_row, attn_f, inputs_emb, pos_emb,
        params["emb_ln_g"], params["emb_ln_b"],
        params["wqkv"], params["bqkv"],
        params["wo"], params["bo"],
        params["ln1_g"], params["ln1_b"],
        params["w1"], params["b1"],
        params["w2"], params["b2"],
        params["ln2_g"], params["ln2_b"],
        params["wp"], params["bp"],
    )
    return pooled[:, 0, :]                                            # [B, D]


# ---------------------------------------------------------------------------
if __name__ == "__main__":
    key = jax.random.PRNGKey(0)
    k_params, k_ids, k_attn = jax.random.split(key, 3)

    params = init_params(k_params)

    # code token ids
    code_inputs = jax.random.randint(k_ids, (B, S), 0, VOCAB, dtype=jnp.int32)

    # GraphCodeBERT position_idx convention: tokens get 2.., data-flow nodes get 0,
    # padding gets 1. Build deterministically: 10 tokens, 4 nodes, 2 pad per row.
    n_tok, n_node = 10, 4
    row = list(range(2, 2 + n_tok)) + [0] * n_node + [1] * (S - n_tok - n_node)
    position_idx = jnp.array([row] * B, dtype=jnp.int32)

    # boolean-style attention mask [B, S, S]
    attn_mask = jax.random.bernoulli(k_attn, 0.7, (B, S, S)).astype(jnp.float32)

    fwd = jax.jit(discriminator_gcb_forward)
    pooled = fwd(params, code_inputs, attn_mask, position_idx)
    jax.block_until_ready(pooled)
    assert pooled.shape == (B, D) and pooled.dtype == jnp.float32
    print("KERNEL_OK")
</pallas_src>

<mosaic_0001>
module attributes {stable_mosaic.version = 11 : i64} {
  func.func @fused_gcb_forward_kernel(%arg0: i32, %arg1: memref<1x16x1xf32, #tpu.memory_space<vmem>>, %arg2: memref<1x1x16xf32, #tpu.memory_space<vmem>>, %arg3: memref<1x16x16xf32, #tpu.memory_space<vmem>>, %arg4: memref<1x16x32xf32, #tpu.memory_space<vmem>>, %arg5: memref<1x16x32xf32, #tpu.memory_space<vmem>>, %arg6: memref<1x32xf32, #tpu.memory_space<vmem>>, %arg7: memref<1x32xf32, #tpu.memory_space<vmem>>, %arg8: memref<32x96xf32, #tpu.memory_space<vmem>>, %arg9: memref<1x96xf32, #tpu.memory_space<vmem>>, %arg10: memref<32x32xf32, #tpu.memory_space<vmem>>, %arg11: memref<1x32xf32, #tpu.memory_space<vmem>>, %arg12: memref<1x32xf32, #tpu.memory_space<vmem>>, %arg13: memref<1x32xf32, #tpu.memory_space<vmem>>, %arg14: memref<32x64xf32, #tpu.memory_space<vmem>>, %arg15: memref<1x64xf32, #tpu.memory_space<vmem>>, %arg16: memref<64x32xf32, #tpu.memory_space<vmem>>, %arg17: memref<1x32xf32, #tpu.memory_space<vmem>>, %arg18: memref<1x32xf32, #tpu.memory_space<vmem>>, %arg19: memref<1x32xf32, #tpu.memory_space<vmem>>, %arg20: memref<32x32xf32, #tpu.memory_space<vmem>>, %arg21: memref<1x32xf32, #tpu.memory_space<vmem>>, %arg22: memref<1x1x32xf32, #tpu.memory_space<vmem>>) attributes {dimension_semantics = [#tpu.dimension_semantics<parallel>], iteration_bounds = array<i64: 2>, scalar_prefetch = 0 : i64, scratch_operands = 0 : i64, tpu.core_type = #tpu.core_type<tc>, window_params = [{transform_indices = @transform_0, window_bounds = array<i64: 1, 16, 1>}, {transform_indices = @transform_1, window_bounds = array<i64: 1, 1, 16>}, {transform_indices = @transform_2, window_bounds = array<i64: 1, 16, 16>}, {transform_indices = @transform_3, window_bounds = array<i64: 1, 16, 32>}, {transform_indices = @transform_4, window_bounds = array<i64: 1, 16, 32>}, {pipeline_mode = #tpu.pipeline_mode<synchronous>, transform_indices = @transform_5, window_bounds = array<i64: 1, 32>}, {pipeline_mode = #tpu.pipeline_mode<synchronous>, transform_indices = @transform_6, window_bounds = array<i64: 1, 32>}, {pipeline_mode = #tpu.pipeline_mode<synchronous>, transform_indices = @transform_7, window_bounds = array<i64: 32, 96>}, {pipeline_mode = #tpu.pipeline_mode<synchronous>, transform_indices = @transform_8, window_bounds = array<i64: 1, 96>}, {pipeline_mode = #tpu.pipeline_mode<synchronous>, transform_indices = @transform_9, window_bounds = array<i64: 32, 32>}, {pipeline_mode = #tpu.pipeline_mode<synchronous>, transform_indices = @transform_10, window_bounds = array<i64: 1, 32>}, {pipeline_mode = #tpu.pipeline_mode<synchronous>, transform_indices = @transform_11, window_bounds = array<i64: 1, 32>}, {pipeline_mode = #tpu.pipeline_mode<synchronous>, transform_indices = @transform_12, window_bounds = array<i64: 1, 32>}, {pipeline_mode = #tpu.pipeline_mode<synchronous>, transform_indices = @transform_13, window_bounds = array<i64: 32, 64>}, {pipeline_mode = #tpu.pipeline_mode<synchronous>, transform_indices = @transform_14, window_bounds = array<i64: 1, 64>}, {pipeline_mode = #tpu.pipeline_mode<synchronous>, transform_indices = @transform_15, window_bounds = array<i64: 64, 32>}, {pipeline_mode = #tpu.pipeline_mode<synchronous>, transform_indices = @transform_16, window_bounds = array<i64: 1, 32>}, {pipeline_mode = #tpu.pipeline_mode<synchronous>, transform_indices = @transform_17, window_bounds = array<i64: 1, 32>}, {pipeline_mode = #tpu.pipeline_mode<synchronous>, transform_indices = @transform_18, window_bounds = array<i64: 1, 32>}, {pipeline_mode = #tpu.pipeline_mode<synchronous>, transform_indices = @transform_19, window_bounds = array<i64: 32, 32>}, {pipeline_mode = #tpu.pipeline_mode<synchronous>, transform_indices = @transform_20, window_bounds = array<i64: 1, 32>}, {transform_indices = @transform_21, window_bounds = array<i64: 1, 1, 32>}]} {
    %c0 = arith.constant 0 : index
    %c0_0 = arith.constant 0 : index
    %c0_1 = arith.constant 0 : index
    %0 = vector.load %arg1[%c0, %c0_0, %c0_1] : memref<1x16x1xf32, #tpu.memory_space<vmem>>, vector<1x16x1xf32>
    %1 = vector.shape_cast %0 : vector<1x16x1xf32> to vector<16x1xf32>
    %c0_2 = arith.constant 0 : index
    %c0_3 = arith.constant 0 : index
    %c0_4 = arith.constant 0 : index
    %2 = vector.load %arg2[%c0_2, %c0_3, %c0_4] : memref<1x1x16xf32, #tpu.memory_space<vmem>>, vector<1x1x16xf32>
    %3 = vector.shape_cast %2 : vector<1x1x16xf32> to vector<1x16xf32>
    %c0_5 = arith.constant 0 : index
    %c0_6 = arith.constant 0 : index
    %c0_7 = arith.constant 0 : index
    %4 = vector.load %arg3[%c0_5, %c0_6, %c0_7] : memref<1x16x16xf32, #tpu.memory_space<vmem>>, vector<1x16x16xf32>
    %5 = vector.shape_cast %4 : vector<1x16x16xf32> to vector<16x16xf32>
    %c0_8 = arith.constant 0 : index
    %c0_9 = arith.constant 0 : index
    %c0_10 = arith.constant 0 : index
    %6 = vector.load %arg4[%c0_8, %c0_9, %c0_10] : memref<1x16x32xf32, #tpu.memory_space<vmem>>, vector<1x16x32xf32>
    %7 = vector.shape_cast %6 : vector<1x16x32xf32> to vector<16x32xf32>
    %8 = vector.broadcast %1 : vector<16x1xf32> to vector<16x16xf32>
    %9 = vector.broadcast %3 : vector<1x16xf32> to vector<16x16xf32>
    %10 = arith.mulf %8, %9 : vector<16x16xf32>
    %11 = arith.mulf %10, %5 : vector<16x16xf32>
    %cst = arith.constant dense<0.000000e+00> : vector<16xf32>
    %12 = vector.multi_reduction <add>, %11, %cst [1] : vector<16x16xf32> to vector<16xf32>
    %13 = vector.shape_cast %12 : vector<16xf32> to vector<16x1xf32>
    %cst_11 = arith.constant 1.000000e-10 : f32
    %14 = vector.broadcast %cst_11 : f32 to vector<16x1xf32>
    %15 = arith.addf %13, %14 : vector<16x1xf32>
    %16 = tpu.reciprocal %15 {approx = true} : vector<16x1xf32> -> vector<16x1xf32>
    %17 = vector.broadcast %16 : vector<16x1xf32> to vector<16x16xf32>
    %18 = arith.mulf %11, %17 : vector<16x16xf32>
    %19 = arith.truncf %18 : vector<16x16xf32> to vector<16x16xbf16>
    %20 = arith.truncf %7 : vector<16x32xf32> to vector<16x32xbf16>
    %cst_12 = arith.constant dense<0.000000e+00> : vector<16x32xf32>
    %21 = tpu.matmul %19, %20, %cst_12 {dimension_numbers = #tpu.dot_dimension_numbers<[1], [0], [0], [1], [0, 0, 1, 1], [], []>} : vector<16x16xbf16>, vector<16x32xbf16>, vector<16x32xf32> -> vector<16x32xf32>
    %cst_13 = arith.constant 1.000000e+00 : f32
    %22 = vector.broadcast %cst_13 : f32 to vector<16x1xf32>
    %23 = arith.subf %22, %1 : vector<16x1xf32>
    %24 = vector.broadcast %23 : vector<16x1xf32> to vector<16x32xf32>
    %25 = arith.mulf %7, %24 : vector<16x32xf32>
    %26 = vector.broadcast %1 : vector<16x1xf32> to vector<16x32xf32>
    %27 = arith.mulf %21, %26 : vector<16x32xf32>
    %28 = arith.addf %25, %27 : vector<16x32xf32>
    %c0_14 = arith.constant 0 : index
    %c0_15 = arith.constant 0 : index
    %c0_16 = arith.constant 0 : index
    %29 = vector.load %arg5[%c0_14, %c0_15, %c0_16] : memref<1x16x32xf32, #tpu.memory_space<vmem>>, vector<1x16x32xf32>
    %30 = vector.shape_cast %29 : vector<1x16x32xf32> to vector<16x32xf32>
    %31 = arith.addf %28, %30 : vector<16x32xf32>
    %c0_17 = arith.constant 0 : index
    %c0_18 = arith.constant 0 : index
    %32 = vector.load %arg6[%c0_17, %c0_18] : memref<1x32xf32, #tpu.memory_space<vmem>>, vector<1x32xf32>
    %c0_19 = arith.constant 0 : index
    %c0_20 = arith.constant 0 : index
    %33 = vector.load %arg7[%c0_19, %c0_20] : memref<1x32xf32, #tpu.memory_space<vmem>>, vector<1x32xf32>
    %cst_21 = arith.constant dense<0.000000e+00> : vector<16xf32>
    %34 = vector.multi_reduction <add>, %31, %cst_21 [1] : vector<16x32xf32> to vector<16xf32>
    %35 = vector.shape_cast %34 : vector<16xf32> to vector<16x1xf32>
    %cst_22 = arith.constant 3.200000e+01 : f32
    %36 = vector.broadcast %cst_22 : f32 to vector<16x1xf32>
    %37 = arith.divf %35, %36 : vector<16x1xf32>
    %38 = vector.broadcast %37 : vector<16x1xf32> to vector<16x32xf32>
    %39 = arith.subf %31, %38 : vector<16x32xf32>
    %40 = arith.mulf %39, %39 : vector<16x32xf32>
    %cst_23 = arith.constant dense<0.000000e+00> : vector<16xf32>
    %41 = vector.multi_reduction <add>, %40, %cst_23 [1] : vector<16x32xf32> to vector<16xf32>
    %42 = vector.shape_cast %41 : vector<16xf32> to vector<16x1xf32>
    %cst_24 = arith.constant 3.200000e+01 : f32
    %43 = vector.broadcast %cst_24 : f32 to vector<16x1xf32>
    %44 = arith.divf %42, %43 : vector<16x1xf32>
    %cst_25 = arith.constant 9.99999974E-6 : f32
    %45 = vector.broadcast %cst_25 : f32 to vector<16x1xf32>
    %46 = arith.addf %44, %45 : vector<16x1xf32>
    %47 = math.rsqrt %46 : vector<16x1xf32>
    %48 = vector.broadcast %47 : vector<16x1xf32> to vector<16x32xf32>
    %49 = arith.mulf %39, %48 : vector<16x32xf32>
    %50 = vector.broadcast %32 : vector<1x32xf32> to vector<16x32xf32>
    %51 = arith.mulf %49, %50 : vector<16x32xf32>
    %52 = vector.broadcast %33 : vector<1x32xf32> to vector<16x32xf32>
    %53 = arith.addf %51, %52 : vector<16x32xf32>
    %cst_26 = arith.constant 1.000000e+00 : f32
    %54 = vector.broadcast %cst_26 : f32 to vector<16x16xf32>
    %55 = arith.subf %54, %5 : vector<16x16xf32>
    %cst_27 = arith.constant -1.000000e+04 : f32
    %56 = vector.broadcast %cst_27 : f32 to vector<16x16xf32>
    %57 = arith.mulf %55, %56 : vector<16x16xf32>
    %c0_28 = arith.constant 0 : index
    %c0_29 = arith.constant 0 : index
    %58 = vector.load %arg8[%c0_28, %c0_29] : memref<32x96xf32, #tpu.memory_space<vmem>>, vector<32x96xf32>
    %59 = arith.truncf %53 : vector<16x32xf32> to vector<16x32xbf16>
    %60 = arith.truncf %58 : vector<32x96xf32> to vector<32x96xbf16>
    %cst_30 = arith.constant dense<0.000000e+00> : vector<16x96xf32>
    %61 = tpu.matmul %59, %60, %cst_30 {dimension_numbers = #tpu.dot_dimension_numbers<[1], [0], [0], [1], [0, 0, 1, 1], [], []>} : vector<16x32xbf16>, vector<32x96xbf16>, vector<16x96xf32> -> vector<16x96xf32>
    %c0_31 = arith.constant 0 : index
    %c0_32 = arith.constant 0 : index
    %62 = vector.load %arg9[%c0_31, %c0_32] : memref<1x96xf32, #tpu.memory_space<vmem>>, vector<1x96xf32>
    %63 = vector.broadcast %62 : vector<1x96xf32> to vector<16x96xf32>
    %64 = arith.addf %61, %63 : vector<16x96xf32>
    %65 = vector.extract_strided_slice %64 {offsets = [0, 0], sizes = [16, 32], strides = [1, 1]} : vector<16x96xf32> to vector<16x32xf32>
    %66 = vector.extract_strided_slice %64 {offsets = [0, 32], sizes = [16, 32], strides = [1, 1]} : vector<16x96xf32> to vector<16x32xf32>
    %67 = vector.extract_strided_slice %64 {offsets = [0, 64], sizes = [16, 32], strides = [1, 1]} : vector<16x96xf32> to vector<16x32xf32>
    %68 = vector.extract_strided_slice %65 {offsets = [0, 0], sizes = [16, 8], strides = [1, 1]} : vector<16x32xf32> to vector<16x8xf32>
    %69 = arith.truncf %68 : vector<16x8xf32> to vector<16x8xbf16>
    %70 = vector.extract_strided_slice %66 {offsets = [0, 0], sizes = [16, 8], strides = [1, 1]} : vector<16x32xf32> to vector<16x8xf32>
    %71 = arith.truncf %70 : vector<16x8xf32> to vector<16x8xbf16>
    %72 = vector.extract_strided_slice %67 {offsets = [0, 0], sizes = [16, 8], strides = [1, 1]} : vector<16x32xf32> to vector<16x8xf32>
    %73 = arith.truncf %72 : vector<16x8xf32> to vector<16x8xbf16>
    %cst_33 = arith.constant dense<0.000000e+00> : vector<16x16xf32>
    %74 = tpu.matmul %69, %71, %cst_33 {dimension_numbers = #tpu.dot_dimension_numbers<[1], [1], [0], [0], [0, 0, 1, 0], [], []>} : vector<16x8xbf16>, vector<16x8xbf16>, vector<16x16xf32> -> vector<16x16xf32>
    %cst_34 = arith.constant 0.353553385 : f32
    %75 = vector.broadcast %cst_34 : f32 to vector<16x16xf32>
    %76 = arith.mulf %74, %75 : vector<16x16xf32>
    %77 = arith.addf %76, %57 : vector<16x16xf32>
    %cst_35 = arith.constant dense<0xFF800000> : vector<16xf32>
    %78 = vector.multi_reduction <maximumf>, %77, %cst_35 [1] : vector<16x16xf32> to vector<16xf32>
    %79 = vector.shape_cast %78 : vector<16xf32> to vector<16x1xf32>
    %80 = vector.broadcast %79 : vector<16x1xf32> to vector<16x16xf32>
    %81 = arith.subf %77, %80 : vector<16x16xf32>
    %82 = math.exp %81 : vector<16x16xf32>
    %cst_36 = arith.constant dense<0.000000e+00> : vector<16xf32>
    %83 = vector.multi_reduction <add>, %82, %cst_36 [1] : vector<16x16xf32> to vector<16xf32>
    %84 = vector.shape_cast %83 : vector<16xf32> to vector<16x1xf32>
    %85 = tpu.reciprocal %84 {approx = true} : vector<16x1xf32> -> vector<16x1xf32>
    %86 = vector.broadcast %85 : vector<16x1xf32> to vector<16x16xf32>
    %87 = arith.mulf %82, %86 : vector<16x16xf32>
    %88 = arith.truncf %87 : vector<16x16xf32> to vector<16x16xbf16>
    %cst_37 = arith.constant dense<0.000000e+00> : vector<16x8xf32>
    %89 = tpu.matmul %88, %73, %cst_37 {dimension_numbers = #tpu.dot_dimension_numbers<[1], [0], [0], [1], [0, 0, 1, 1], [], []>} : vector<16x16xbf16>, vector<16x8xbf16>, vector<16x8xf32> -> vector<16x8xf32>
    %90 = vector.extract_strided_slice %65 {offsets = [0, 8], sizes = [16, 8], strides = [1, 1]} : vector<16x32xf32> to vector<16x8xf32>
    %91 = arith.truncf %90 : vector<16x8xf32> to vector<16x8xbf16>
    %92 = vector.extract_strided_slice %66 {offsets = [0, 8], sizes = [16, 8], strides = [1, 1]} : vector<16x32xf32> to vector<16x8xf32>
    %93 = arith.truncf %92 : vector<16x8xf32> to vector<16x8xbf16>
    %94 = vector.extract_strided_slice %67 {offsets = [0, 8], sizes = [16, 8], strides = [1, 1]} : vector<16x32xf32> to vector<16x8xf32>
    %95 = arith.truncf %94 : vector<16x8xf32> to vector<16x8xbf16>
    %cst_38 = arith.constant dense<0.000000e+00> : vector<16x16xf32>
    %96 = tpu.matmul %91, %93, %cst_38 {dimension_numbers = #tpu.dot_dimension_numbers<[1], [1], [0], [0], [0, 0, 1, 0], [], []>} : vector<16x8xbf16>, vector<16x8xbf16>, vector<16x16xf32> -> vector<16x16xf32>
    %cst_39 = arith.constant 0.353553385 : f32
    %97 = vector.broadcast %cst_39 : f32 to vector<16x16xf32>
    %98 = arith.mulf %96, %97 : vector<16x16xf32>
    %99 = arith.addf %98, %57 : vector<16x16xf32>
    %cst_40 = arith.constant dense<0xFF800000> : vector<16xf32>
    %100 = vector.multi_reduction <maximumf>, %99, %cst_40 [1] : vector<16x16xf32> to vector<16xf32>
    %101 = vector.shape_cast %100 : vector<16xf32> to vector<16x1xf32>
    %102 = vector.broadcast %101 : vector<16x1xf32> to vector<16x16xf32>
    %103 = arith.subf %99, %102 : vector<16x16xf32>
    %104 = math.exp %103 : vector<16x16xf32>
    %cst_41 = arith.constant dense<0.000000e+00> : vector<16xf32>
    %105 = vector.multi_reduction <add>, %104, %cst_41 [1] : vector<16x16xf32> to vector<16xf32>
    %106 = vector.shape_cast %105 : vector<16xf32> to vector<16x1xf32>
    %107 = tpu.reciprocal %106 {approx = true} : vector<16x1xf32> -> vector<16x1xf32>
    %108 = vector.broadcast %107 : vector<16x1xf32> to vector<16x16xf32>
    %109 = arith.mulf %104, %108 : vector<16x16xf32>
    %110 = arith.truncf %109 : vector<16x16xf32> to vector<16x16xbf16>
    %cst_42 = arith.constant dense<0.000000e+00> : vector<16x8xf32>
    %111 = tpu.matmul %110, %95, %cst_42 {dimension_numbers = #tpu.dot_dimension_numbers<[1], [0], [0], [1], [0, 0, 1, 1], [], []>} : vector<16x16xbf16>, vector<16x8xbf16>, vector<16x8xf32> -> vector<16x8xf32>
    %112 = vector.extract_strided_slice %65 {offsets = [0, 16], sizes = [16, 8], strides = [1, 1]} : vector<16x32xf32> to vector<16x8xf32>
    %113 = arith.truncf %112 : vector<16x8xf32> to vector<16x8xbf16>
    %114 = vector.extract_strided_slice %66 {offsets = [0, 16], sizes = [16, 8], strides = [1, 1]} : vector<16x32xf32> to vector<16x8xf32>
    %115 = arith.truncf %114 : vector<16x8xf32> to vector<16x8xbf16>
    %116 = vector.extract_strided_slice %67 {offsets = [0, 16], sizes = [16, 8], strides = [1, 1]} : vector<16x32xf32> to vector<16x8xf32>
    %117 = arith.truncf %116 : vector<16x8xf32> to vector<16x8xbf16>
    %cst_43 = arith.constant dense<0.000000e+00> : vector<16x16xf32>
    %118 = tpu.matmul %113, %115, %cst_43 {dimension_numbers = #tpu.dot_dimension_numbers<[1], [1], [0], [0], [0, 0, 1, 0], [], []>} : vector<16x8xbf16>, vector<16x8xbf16>, vector<16x16xf32> -> vector<16x16xf32>
    %cst_44 = arith.constant 0.353553385 : f32
    %119 = vector.broadcast %cst_44 : f32 to vector<16x16xf32>
    %120 = arith.mulf %118, %119 : vector<16x16xf32>
    %121 = arith.addf %120, %57 : vector<16x16xf32>
    %cst_45 = arith.constant dense<0xFF800000> : vector<16xf32>
    %122 = vector.multi_reduction <maximumf>, %121, %cst_45 [1] : vector<16x16xf32> to vector<16xf32>
    %123 = vector.shape_cast %122 : vector<16xf32> to vector<16x1xf32>
    %124 = vector.broadcast %123 : vector<16x1xf32> to vector<16x16xf32>
    %125 = arith.subf %121, %124 : vector<16x16xf32>
    %126 = math.exp %125 : vector<16x16xf32>
    %cst_46 = arith.constant dense<0.000000e+00> : vector<16xf32>
    %127 = vector.multi_reduction <add>, %126, %cst_46 [1] : vector<16x16xf32> to vector<16xf32>
    %128 = vector.shape_cast %127 : vector<16xf32> to vector<16x1xf32>
    %129 = tpu.reciprocal %128 {approx = true} : vector<16x1xf32> -> vector<16x1xf32>
    %130 = vector.broadcast %129 : vector<16x1xf32> to vector<16x16xf32>
    %131 = arith.mulf %126, %130 : vector<16x16xf32>
    %132 = arith.truncf %131 : vector<16x16xf32> to vector<16x16xbf16>
    %cst_47 = arith.constant dense<0.000000e+00> : vector<16x8xf32>
    %133 = tpu.matmul %132, %117, %cst_47 {dimension_numbers = #tpu.dot_dimension_numbers<[1], [0], [0], [1], [0, 0, 1, 1], [], []>} : vector<16x16xbf16>, vector<16x8xbf16>, vector<16x8xf32> -> vector<16x8xf32>
    %134 = vector.extract_strided_slice %65 {offsets = [0, 24], sizes = [16, 8], strides = [1, 1]} : vector<16x32xf32> to vector<16x8xf32>
    %135 = arith.truncf %134 : vector<16x8xf32> to vector<16x8xbf16>
    %136 = vector.extract_strided_slice %66 {offsets = [0, 24], sizes = [16, 8], strides = [1, 1]} : vector<16x32xf32> to vector<16x8xf32>
    %137 = arith.truncf %136 : vector<16x8xf32> to vector<16x8xbf16>
    %138 = vector.extract_strided_slice %67 {offsets = [0, 24], sizes = [16, 8], strides = [1, 1]} : vector<16x32xf32> to vector<16x8xf32>
    %139 = arith.truncf %138 : vector<16x8xf32> to vector<16x8xbf16>
    %cst_48 = arith.constant dense<0.000000e+00> : vector<16x16xf32>
    %140 = tpu.matmul %135, %137, %cst_48 {dimension_numbers = #tpu.dot_dimension_numbers<[1], [1], [0], [0], [0, 0, 1, 0], [], []>} : vector<16x8xbf16>, vector<16x8xbf16>, vector<16x16xf32> -> vector<16x16xf32>
    %cst_49 = arith.constant 0.353553385 : f32
    %141 = vector.broadcast %cst_49 : f32 to vector<16x16xf32>
    %142 = arith.mulf %140, %141 : vector<16x16xf32>
    %143 = arith.addf %142, %57 : vector<16x16xf32>
    %cst_50 = arith.constant dense<0xFF800000> : vector<16xf32>
    %144 = vector.multi_reduction <maximumf>, %143, %cst_50 [1] : vector<16x16xf32> to vector<16xf32>
    %145 = vector.shape_cast %144 : vector<16xf32> to vector<16x1xf32>
    %146 = vector.broadcast %145 : vector<16x1xf32> to vector<16x16xf32>
    %147 = arith.subf %143, %146 : vector<16x16xf32>
    %148 = math.exp %147 : vector<16x16xf32>
    %cst_51 = arith.constant dense<0.000000e+00> : vector<16xf32>
    %149 = vector.multi_reduction <add>, %148, %cst_51 [1] : vector<16x16xf32> to vector<16xf32>
    %150 = vector.shape_cast %149 : vector<16xf32> to vector<16x1xf32>
    %151 = tpu.reciprocal %150 {approx = true} : vector<16x1xf32> -> vector<16x1xf32>
    %152 = vector.broadcast %151 : vector<16x1xf32> to vector<16x16xf32>
    %153 = arith.mulf %148, %152 : vector<16x16xf32>
    %154 = arith.truncf %153 : vector<16x16xf32> to vector<16x16xbf16>
    %cst_52 = arith.constant dense<0.000000e+00> : vector<16x8xf32>
    %155 = tpu.matmul %154, %139, %cst_52 {dimension_numbers = #tpu.dot_dimension_numbers<[1], [0], [0], [1], [0, 0, 1, 1], [], []>} : vector<16x16xbf16>, vector<16x8xbf16>, vector<16x8xf32> -> vector<16x8xf32>
    %156 = tpu.concatenate %89, %111, %133, %155 in 1 : vector<16x8xf32>, vector<16x8xf32>, vector<16x8xf32>, vector<16x8xf32> -> vector<16x32xf32>
    %c0_53 = arith.constant 0 : index
    %c0_54 = arith.constant 0 : index
    %157 = vector.load %arg10[%c0_53, %c0_54] : memref<32x32xf32, #tpu.memory_space<vmem>>, vector<32x32xf32>
    %158 = arith.truncf %156 : vector<16x32xf32> to vector<16x32xbf16>
    %159 = arith.truncf %157 : vector<32x32xf32> to vector<32x32xbf16>
    %cst_55 = arith.constant dense<0.000000e+00> : vector<16x32xf32>
    %160 = tpu.matmul %158, %159, %cst_55 {dimension_numbers = #tpu.dot_dimension_numbers<[1], [0], [0], [1], [0, 0, 1, 1], [], []>} : vector<16x32xbf16>, vector<32x32xbf16>, vector<16x32xf32> -> vector<16x32xf32>
    %c0_56 = arith.constant 0 : index
    %c0_57 = arith.constant 0 : index
    %161 = vector.load %arg11[%c0_56, %c0_57] : memref<1x32xf32, #tpu.memory_space<vmem>>, vector<1x32xf32>
    %162 = vector.broadcast %161 : vector<1x32xf32> to vector<16x32xf32>
    %163 = arith.addf %160, %162 : vector<16x32xf32>
    %164 = arith.addf %53, %163 : vector<16x32xf32>
    %c0_58 = arith.constant 0 : index
    %c0_59 = arith.constant 0 : index
    %165 = vector.load %arg12[%c0_58, %c0_59] : memref<1x32xf32, #tpu.memory_space<vmem>>, vector<1x32xf32>
    %c0_60 = arith.constant 0 : index
    %c0_61 = arith.constant 0 : index
    %166 = vector.load %arg13[%c0_60, %c0_61] : memref<1x32xf32, #tpu.memory_space<vmem>>, vector<1x32xf32>
    %cst_62 = arith.constant dense<0.000000e+00> : vector<16xf32>
    %167 = vector.multi_reduction <add>, %164, %cst_62 [1] : vector<16x32xf32> to vector<16xf32>
    %168 = vector.shape_cast %167 : vector<16xf32> to vector<16x1xf32>
    %cst_63 = arith.constant 3.200000e+01 : f32
    %169 = vector.broadcast %cst_63 : f32 to vector<16x1xf32>
    %170 = arith.divf %168, %169 : vector<16x1xf32>
    %171 = vector.broadcast %170 : vector<16x1xf32> to vector<16x32xf32>
    %172 = arith.subf %164, %171 : vector<16x32xf32>
    %173 = arith.mulf %172, %172 : vector<16x32xf32>
    %cst_64 = arith.constant dense<0.000000e+00> : vector<16xf32>
    %174 = vector.multi_reduction <add>, %173, %cst_64 [1] : vector<16x32xf32> to vector<16xf32>
    %175 = vector.shape_cast %174 : vector<16xf32> to vector<16x1xf32>
    %cst_65 = arith.constant 3.200000e+01 : f32
    %176 = vector.broadcast %cst_65 : f32 to vector<16x1xf32>
    %177 = arith.divf %175, %176 : vector<16x1xf32>
    %cst_66 = arith.constant 9.99999974E-6 : f32
    %178 = vector.broadcast %cst_66 : f32 to vector<16x1xf32>
    %179 = arith.addf %177, %178 : vector<16x1xf32>
    %180 = math.rsqrt %179 : vector<16x1xf32>
    %181 = vector.broadcast %180 : vector<16x1xf32> to vector<16x32xf32>
    %182 = arith.mulf %172, %181 : vector<16x32xf32>
    %183 = vector.broadcast %165 : vector<1x32xf32> to vector<16x32xf32>
    %184 = arith.mulf %182, %183 : vector<16x32xf32>
    %185 = vector.broadcast %166 : vector<1x32xf32> to vector<16x32xf32>
    %186 = arith.addf %184, %185 : vector<16x32xf32>
    %c0_67 = arith.constant 0 : index
    %c0_68 = arith.constant 0 : index
    %187 = vector.load %arg14[%c0_67, %c0_68] : memref<32x64xf32, #tpu.memory_space<vmem>>, vector<32x64xf32>
    %188 = arith.truncf %186 : vector<16x32xf32> to vector<16x32xbf16>
    %189 = arith.truncf %187 : vector<32x64xf32> to vector<32x64xbf16>
    %cst_69 = arith.constant dense<0.000000e+00> : vector<16x64xf32>
    %190 = tpu.matmul %188, %189, %cst_69 {dimension_numbers = #tpu.dot_dimension_numbers<[1], [0], [0], [1], [0, 0, 1, 1], [], []>} : vector<16x32xbf16>, vector<32x64xbf16>, vector<16x64xf32> -> vector<16x64xf32>
    %c0_70 = arith.constant 0 : index
    %c0_71 = arith.constant 0 : index
    %191 = vector.load %arg15[%c0_70, %c0_71] : memref<1x64xf32, #tpu.memory_space<vmem>>, vector<1x64xf32>
    %192 = vector.broadcast %191 : vector<1x64xf32> to vector<16x64xf32>
    %193 = arith.addf %190, %192 : vector<16x64xf32>
    %194 = arith.mulf %193, %193 : vector<16x64xf32>
    %195 = arith.mulf %193, %194 : vector<16x64xf32>
    %cst_72 = arith.constant 4.471500e-02 : f32
    %196 = vector.broadcast %cst_72 : f32 to vector<16x64xf32>
    %197 = arith.mulf %196, %195 : vector<16x64xf32>
    %198 = arith.addf %193, %197 : vector<16x64xf32>
    %cst_73 = arith.constant 0.797884583 : f32
    %199 = vector.broadcast %cst_73 : f32 to vector<16x64xf32>
    %200 = arith.mulf %199, %198 : vector<16x64xf32>
    %201 = math.tanh %200 : vector<16x64xf32>
    %cst_74 = arith.constant 1.000000e+00 : f32
    %202 = vector.broadcast %cst_74 : f32 to vector<16x64xf32>
    %203 = arith.addf %202, %201 : vector<16x64xf32>
    %cst_75 = arith.constant 5.000000e-01 : f32
    %204 = vector.broadcast %cst_75 : f32 to vector<16x64xf32>
    %205 = arith.mulf %204, %203 : vector<16x64xf32>
    %206 = arith.mulf %193, %205 : vector<16x64xf32>
    %c0_76 = arith.constant 0 : index
    %c0_77 = arith.constant 0 : index
    %207 = vector.load %arg16[%c0_76, %c0_77] : memref<64x32xf32, #tpu.memory_space<vmem>>, vector<64x32xf32>
    %208 = arith.truncf %206 : vector<16x64xf32> to vector<16x64xbf16>
    %209 = arith.truncf %207 : vector<64x32xf32> to vector<64x32xbf16>
    %cst_78 = arith.constant dense<0.000000e+00> : vector<16x32xf32>
    %210 = tpu.matmul %208, %209, %cst_78 {dimension_numbers = #tpu.dot_dimension_numbers<[1], [0], [0], [1], [0, 0, 1, 1], [], []>} : vector<16x64xbf16>, vector<64x32xbf16>, vector<16x32xf32> -> vector<16x32xf32>
    %c0_79 = arith.constant 0 : index
    %c0_80 = arith.constant 0 : index
    %211 = vector.load %arg17[%c0_79, %c0_80] : memref<1x32xf32, #tpu.memory_space<vmem>>, vector<1x32xf32>
    %212 = vector.broadcast %211 : vector<1x32xf32> to vector<16x32xf32>
    %213 = arith.addf %210, %212 : vector<16x32xf32>
    %214 = arith.addf %186, %213 : vector<16x32xf32>
    %c0_81 = arith.constant 0 : index
    %c0_82 = arith.constant 0 : index
    %215 = vector.load %arg18[%c0_81, %c0_82] : memref<1x32xf32, #tpu.memory_space<vmem>>, vector<1x32xf32>
    %c0_83 = arith.constant 0 : index
    %c0_84 = arith.constant 0 : index
    %216 = vector.load %arg19[%c0_83, %c0_84] : memref<1x32xf32, #tpu.memory_space<vmem>>, vector<1x32xf32>
    %cst_85 = arith.constant dense<0.000000e+00> : vector<16xf32>
    %217 = vector.multi_reduction <add>, %214, %cst_85 [1] : vector<16x32xf32> to vector<16xf32>
    %218 = vector.shape_cast %217 : vector<16xf32> to vector<16x1xf32>
    %cst_86 = arith.constant 3.200000e+01 : f32
    %219 = vector.broadcast %cst_86 : f32 to vector<16x1xf32>
    %220 = arith.divf %218, %219 : vector<16x1xf32>
    %221 = vector.broadcast %220 : vector<16x1xf32> to vector<16x32xf32>
    %222 = arith.subf %214, %221 : vector<16x32xf32>
    %223 = arith.mulf %222, %222 : vector<16x32xf32>
    %cst_87 = arith.constant dense<0.000000e+00> : vector<16xf32>
    %224 = vector.multi_reduction <add>, %223, %cst_87 [1] : vector<16x32xf32> to vector<16xf32>
    %225 = vector.shape_cast %224 : vector<16xf32> to vector<16x1xf32>
    %cst_88 = arith.constant 3.200000e+01 : f32
    %226 = vector.broadcast %cst_88 : f32 to vector<16x1xf32>
    %227 = arith.divf %225, %226 : vector<16x1xf32>
    %cst_89 = arith.constant 9.99999974E-6 : f32
    %228 = vector.broadcast %cst_89 : f32 to vector<16x1xf32>
    %229 = arith.addf %227, %228 : vector<16x1xf32>
    %230 = math.rsqrt %229 : vector<16x1xf32>
    %231 = vector.broadcast %230 : vector<16x1xf32> to vector<16x32xf32>
    %232 = arith.mulf %222, %231 : vector<16x32xf32>
    %233 = vector.broadcast %215 : vector<1x32xf32> to vector<16x32xf32>
    %234 = arith.mulf %232, %233 : vector<16x32xf32>
    %235 = vector.broadcast %216 : vector<1x32xf32> to vector<16x32xf32>
    %236 = arith.addf %234, %235 : vector<16x32xf32>
    %237 = vector.extract_strided_slice %236 {offsets = [0, 0], sizes = [1, 32], strides = [1, 1]} : vector<16x32xf32> to vector<1x32xf32>
    %c0_90 = arith.constant 0 : index
    %c0_91 = arith.constant 0 : index
    %238 = vector.load %arg20[%c0_90, %c0_91] : memref<32x32xf32, #tpu.memory_space<vmem>>, vector<32x32xf32>
    %239 = arith.truncf %237 : vector<1x32xf32> to vector<1x32xbf16>
    %240 = arith.truncf %238 : vector<32x32xf32> to vector<32x32xbf16>
    %cst_92 = arith.constant dense<0.000000e+00> : vector<1x32xf32>
    %241 = tpu.matmul %239, %240, %cst_92 {dimension_numbers = #tpu.dot_dimension_numbers<[1], [0], [0], [1], [0, 0, 1, 1], [], []>} : vector<1x32xbf16>, vector<32x32xbf16>, vector<1x32xf32> -> vector<1x32xf32>
    %c0_93 = arith.constant 0 : index
    %c0_94 = arith.constant 0 : index
    %242 = vector.load %arg21[%c0_93, %c0_94] : memref<1x32xf32, #tpu.memory_space<vmem>>, vector<1x32xf32>
    %243 = arith.addf %241, %242 : vector<1x32xf32>
    %244 = math.tanh %243 : vector<1x32xf32>
    %c0_95 = arith.constant 0 : index
    %c0_96 = arith.constant 0 : index
    %c0_97 = arith.constant 0 : index
    %245 = vector.load %arg22[%c0_95, %c0_96, %c0_97] : memref<1x1x32xf32, #tpu.memory_space<vmem>>, vector<1x1x32xf32>
    %246 = vector.shape_cast %245 : vector<1x1x32xf32> to vector<1x32xf32>
    %247 = vector.shape_cast %244 : vector<1x32xf32> to vector<1x1x32xf32>
    tpu.vector_store %arg22[%c0_95, %c0_96, %c0_97], %247 {strides = array<i32>} : memref<1x1x32xf32, #tpu.memory_space<vmem>>, vector<1x1x32xf32>,
    return
  }
  func.func @transform_0(%arg0: i32) -> (i32, i32, i32) {
    %c0_i32 = arith.constant 0 : i32
    %c0_i32_0 = arith.constant 0 : i32
    %c0_i32_1 = arith.constant 0 : i32
    return %arg0, %c0_i32, %c0_i32_0 : i32, i32, i32
  }
  func.func @transform_1(%arg0: i32) -> (i32, i32, i32) {
    %c0_i32 = arith.constant 0 : i32
    %c0_i32_0 = arith.constant 0 : i32
    %c0_i32_1 = arith.constant 0 : i32
    return %arg0, %c0_i32, %c0_i32_0 : i32, i32, i32
  }
  func.func @transform_2(%arg0: i32) -> (i32, i32, i32) {
    %c0_i32 = arith.constant 0 : i32
    %c0_i32_0 = arith.constant 0 : i32
    %c0_i32_1 = arith.constant 0 : i32
    return %arg0, %c0_i32, %c0_i32_0 : i32, i32, i32
  }
  func.func @transform_3(%arg0: i32) -> (i32, i32, i32) {
    %c0_i32 = arith.constant 0 : i32
    %c0_i32_0 = arith.constant 0 : i32
    %c0_i32_1 = arith.constant 0 : i32
    return %arg0, %c0_i32, %c0_i32_0 : i32, i32, i32
  }
  func.func @transform_4(%arg0: i32) -> (i32, i32, i32) {
    %c0_i32 = arith.constant 0 : i32
    %c0_i32_0 = arith.constant 0 : i32
    %c0_i32_1 = arith.constant 0 : i32
    return %arg0, %c0_i32, %c0_i32_0 : i32, i32, i32
  }
  func.func @transform_5(%arg0: i32) -> (i32, i32) {
    %c0_i32 = arith.constant 0 : i32
    %c0_i32_0 = arith.constant 0 : i32
    %c0_i32_1 = arith.constant 0 : i32
    return %c0_i32, %c0_i32_0 : i32, i32
  }
  func.func @transform_6(%arg0: i32) -> (i32, i32) {
    %c0_i32 = arith.constant 0 : i32
    %c0_i32_0 = arith.constant 0 : i32
    %c0_i32_1 = arith.constant 0 : i32
    return %c0_i32, %c0_i32_0 : i32, i32
  }
  func.func @transform_7(%arg0: i32) -> (i32, i32) {
    %c0_i32 = arith.constant 0 : i32
    %c0_i32_0 = arith.constant 0 : i32
    %c0_i32_1 = arith.constant 0 : i32
    return %c0_i32, %c0_i32_0 : i32, i32
  }
  func.func @transform_8(%arg0: i32) -> (i32, i32) {
    %c0_i32 = arith.constant 0 : i32
    %c0_i32_0 = arith.constant 0 : i32
    %c0_i32_1 = arith.constant 0 : i32
    return %c0_i32, %c0_i32_0 : i32, i32
  }
  func.func @transform_9(%arg0: i32) -> (i32, i32) {
    %c0_i32 = arith.constant 0 : i32
    %c0_i32_0 = arith.constant 0 : i32
    %c0_i32_1 = arith.constant 0 : i32
    return %c0_i32, %c0_i32_0 : i32, i32
  }
  func.func @transform_10(%arg0: i32) -> (i32, i32) {
    %c0_i32 = arith.constant 0 : i32
    %c0_i32_0 = arith.constant 0 : i32
    %c0_i32_1 = arith.constant 0 : i32
    return %c0_i32, %c0_i32_0 : i32, i32
  }
  func.func @transform_11(%arg0: i32) -> (i32, i32) {
    %c0_i32 = arith.constant 0 : i32
    %c0_i32_0 = arith.constant 0 : i32
    %c0_i32_1 = arith.constant 0 : i32
    return %c0_i32, %c0_i32_0 : i32, i32
  }
  func.func @transform_12(%arg0: i32) -> (i32, i32) {
    %c0_i32 = arith.constant 0 : i32
    %c0_i32_0 = arith.constant 0 : i32
    %c0_i32_1 = arith.constant 0 : i32
    return %c0_i32, %c0_i32_0 : i32, i32
  }
  func.func @transform_13(%arg0: i32) -> (i32, i32) {
    %c0_i32 = arith.constant 0 : i32
    %c0_i32_0 = arith.constant 0 : i32
    %c0_i32_1 = arith.constant 0 : i32
    return %c0_i32, %c0_i32_0 : i32, i32
  }
  func.func @transform_14(%arg0: i32) -> (i32, i32) {
    %c0_i32 = arith.constant 0 : i32
    %c0_i32_0 = arith.constant 0 : i32
    %c0_i32_1 = arith.constant 0 : i32
    return %c0_i32, %c0_i32_0 : i32, i32
  }
  func.func @transform_15(%arg0: i32) -> (i32, i32) {
    %c0_i32 = arith.constant 0 : i32
    %c0_i32_0 = arith.constant 0 : i32
    %c0_i32_1 = arith.constant 0 : i32
    return %c0_i32, %c0_i32_0 : i32, i32
  }
  func.func @transform_16(%arg0: i32) -> (i32, i32) {
    %c0_i32 = arith.constant 0 : i32
    %c0_i32_0 = arith.constant 0 : i32
    %c0_i32_1 = arith.constant 0 : i32
    return %c0_i32, %c0_i32_0 : i32, i32
  }
  func.func @transform_17(%arg0: i32) -> (i32, i32) {
    %c0_i32 = arith.constant 0 : i32
    %c0_i32_0 = arith.constant 0 : i32
    %c0_i32_1 = arith.constant 0 : i32
    return %c0_i32, %c0_i32_0 : i32, i32
  }
  func.func @transform_18(%arg0: i32) -> (i32, i32) {
    %c0_i32 = arith.constant 0 : i32
    %c0_i32_0 = arith.constant 0 : i32
    %c0_i32_1 = arith.constant 0 : i32
    return %c0_i32, %c0_i32_0 : i32, i32
  }
  func.func @transform_19(%arg0: i32) -> (i32, i32) {
    %c0_i32 = arith.constant 0 : i32
    %c0_i32_0 = arith.constant 0 : i32
    %c0_i32_1 = arith.constant 0 : i32
    return %c0_i32, %c0_i32_0 : i32, i32
  }
  func.func @transform_20(%arg0: i32) -> (i32, i32) {
    %c0_i32 = arith.constant 0 : i32
    %c0_i32_0 = arith.constant 0 : i32
    %c0_i32_1 = arith.constant 0 : i32
    return %c0_i32, %c0_i32_0 : i32, i32
  }
  func.func @transform_21(%arg0: i32) -> (i32, i32, i32) {
    %c0_i32 = arith.constant 0 : i32
    %c0_i32_0 = arith.constant 0 : i32
    %c0_i32_1 = arith.constant 0 : i32
    return %arg0, %c0_i32, %c0_i32_0 : i32, i32, i32
  }
}

</mosaic_0001>

<llo_original>
// kernel: discriminator_gcb_forward.1
$region0: #{discriminator_gcb_forward.1}
  #allocation0 [shape = 'u32[]', space=smem, size = 0x4, offset = 0x4, fixed_abs, tag = 'smem constant byte address 0x4 - core index']
  #allocation1 [shape = 'u32[144,128]{1,0:T(1,128)}', space=vmem, size = 0x12000, scoped, tag = 'internal scratch']
  %s0 = inlined_call_operand.vmem [shape: f32[2,16,1], index: 0, kind: input, shape index: {}]
  %s1 = inlined_call_operand.vmem [shape: f32[2,1,16], index: 1, kind: input, shape index: {}]
  %s2 = inlined_call_operand.vmem [shape: f32[2,16,16], index: 2, kind: input, shape index: {}]
  %s3 = inlined_call_operand.vmem [shape: f32[2,16,32], index: 3, kind: input, shape index: {}]
  %s4 = inlined_call_operand.vmem [shape: f32[2,16,32], index: 4, kind: input, shape index: {}]
  %s5 = inlined_call_operand.vmem [shape: f32[1,32], index: 5, kind: input, shape index: {}]
  %s6 = inlined_call_operand.vmem [shape: f32[1,32], index: 6, kind: input, shape index: {}]
  %s7 = inlined_call_operand.vmem [shape: f32[32,96], index: 7, kind: input, shape index: {}]
  %s8 = inlined_call_operand.vmem [shape: f32[1,96], index: 8, kind: input, shape index: {}]
  %s9 = inlined_call_operand.vmem [shape: f32[32,32], index: 9, kind: input, shape index: {}]
  %s10 = inlined_call_operand.vmem [shape: f32[1,32], index: 10, kind: input, shape index: {}]
  %s11 = inlined_call_operand.vmem [shape: f32[1,32], index: 11, kind: input, shape index: {}]
  %s12 = inlined_call_operand.vmem [shape: f32[1,32], index: 12, kind: input, shape index: {}]
  %s13 = inlined_call_operand.vmem [shape: f32[32,64], index: 13, kind: input, shape index: {}]
  %s14 = inlined_call_operand.vmem [shape: f32[1,64], index: 14, kind: input, shape index: {}]
  %s15 = inlined_call_operand.vmem [shape: f32[64,32], index: 15, kind: input, shape index: {}]
  %s16 = inlined_call_operand.vmem [shape: f32[1,32], index: 16, kind: input, shape index: {}]
  %s17 = inlined_call_operand.vmem [shape: f32[1,32], index: 17, kind: input, shape index: {}]
  %s18 = inlined_call_operand.vmem [shape: f32[1,32], index: 18, kind: input, shape index: {}]
  %s19 = inlined_call_operand.vmem [shape: f32[32,32], index: 19, kind: input, shape index: {}]
  %s20 = inlined_call_operand.vmem [shape: f32[1,32], index: 20, kind: input, shape index: {}]
  %s21 = inlined_call_operand.hbm [shape: f32[2,1,32], index: 21, kind: output, shape index: {}]
  %s22 = sld [smem:[#allocation0]]
  $region117: #{discriminator_gcb_forward.1} parent=0
    _
  %s24 = ssub.s32 1, %s22
  %s25 = scalar_select 0, %s24, %s22
  $region1: #{discriminator_gcb_forward.1} parent=0
    #allocation2 [shape = 'u8[1024]{0}', space=vmem, size = 0x400, scoped, tag = 'output window, operand 0']
    #allocation3 [shape = 's32[2]{0}', space=sflag, size = 0x8, scoped, tag = 'scoped memory for discriminator_gcb_forward.1']
    %26 = vsyncpa [#allocation3], 0
    %s27 = scalar_lea.sflag [#allocation3], 1
    %28 = vsyncpa %s27, 0
    loop: start=0, step=1, limit=4
    $region2: #{discriminator_gcb_forward.1} parent=1 // loop_pre_header
      _
    $region3: #{discriminator_gcb_forward.1} parent=1 // loop_header
      %s30 = sphi 0, %s34
      %p31 = scmp.ge.s32.totalorder %s30, 4
      %s40 = sphi 0, %s42
      %s43 = sphi 0, %s40
      %s44 = sphi 0, %s43
      %s60 = sphi 0, %s44
      %s66 = sphi 0, %s68
      %s69 = sphi 0, %s66
      %s70 = sphi 0, %s69
      %s86 = sphi 0, %s70
      %s92 = sphi 0, %s94
      %s95 = sphi 0, %s92
      %s96 = sphi 0, %s95
      %s112 = sphi 0, %s96
      %s118 = sphi 0, %s120
      %s121 = sphi 0, %s118
      %s122 = sphi 0, %s121
      %s138 = sphi 0, %s122
      %s144 = sphi 0, %s146
      %s147 = sphi 0, %s144
      %s148 = sphi 0, %s147
      %s164 = sphi 0, %s148
      %s168 = sphi 0, %s168
      %s170 = sphi 0, %s168
      %s171 = sphi 0, %s170
      %s185 = sphi 0, %s171
      %s189 = sphi 0, %s189
      %s191 = sphi 0, %s189
      %s192 = sphi 0, %s191
      %s206 = sphi 0, %s192
      %s210 = sphi 0, %s210
      %s212 = sphi 0, %s210
      %s213 = sphi 0, %s212
      %s227 = sphi 0, %s213
      %s231 = sphi 0, %s231
      %s233 = sphi 0, %s231
      %s234 = sphi 0, %s233
      %s248 = sphi 0, %s234
      %s252 = sphi 0, %s252
      %s254 = sphi 0, %s252
      %s255 = sphi 0, %s254
      %s269 = sphi 0, %s255
      %s273 = sphi 0, %s273
      %s275 = sphi 0, %s273
      %s276 = sphi 0, %s275
      %s290 = sphi 0, %s276
      %s294 = sphi 0, %s294
      %s296 = sphi 0, %s294
      %s297 = sphi 0, %s296
      %s311 = sphi 0, %s297
      %s315 = sphi 0, %s315
      %s317 = sphi 0, %s315
      %s318 = sphi 0, %s317
      %s332 = sphi 0, %s318
      %s336 = sphi 0, %s336
      %s338 = sphi 0, %s336
      %s339 = sphi 0, %s338
      %s353 = sphi 0, %s339
      %s357 = sphi 0, %s357
      %s359 = sphi 0, %s357
      %s360 = sphi 0, %s359
      %s374 = sphi 0, %s360
      %s378 = sphi 0, %s378
      %s380 = sphi 0, %s378
      %s381 = sphi 0, %s380
      %s395 = sphi 0, %s381
      %s399 = sphi 0, %s399
      %s401 = sphi 0, %s399
      %s402 = sphi 0, %s401
      %s416 = sphi 0, %s402
      %s420 = sphi 0, %s420
      %s422 = sphi 0, %s420
      %s423 = sphi 0, %s422
      %s437 = sphi 0, %s423
      %s441 = sphi 0, %s441
      %s443 = sphi 0, %s441
      %s444 = sphi 0, %s443
      %s458 = sphi 0, %s444
      %s462 = sphi 0, %s462
      %s464 = sphi 0, %s462
      %s465 = sphi 0, %s464
      %s479 = sphi 0, %s465
      %s483 = sphi 0, %s483
      %s485 = sphi 0, %s483
      %s486 = sphi 0, %s485
      %s500 = sphi 0, %s486
      %s506 = sphi 0, %s508
      %s509 = sphi 0, %s506
      %s510 = sphi 0, %s509
      %s526 = sphi 0, %s510
    $region4: #{discriminator_gcb_forward.1} parent=1 // loop_header_branch
      %33 = sbr.rel (%p31) target = $region8
    $region5: #{discriminator_gcb_forward.1} parent=1 // loop_body
      %s35 = ssub.s32 %s30, 1
      %s36 = ssub.s32 %s30, 2
      %s37 = sadd.s32 %s30, 1
      %s38 = ssub.s32 %s30, %s37
      %p39 = scmp.eq.s32.totalorder %s38, 0
      %s41 = sadd.s32 %s40, 1
      %s42 = scalar_select %p39, %s40, %s41
      %p45 = pneg %p39
      %p46 = scmp.eq.s32.totalorder %s30, 1
      %p47 = por %p45, %p46
      %p48 = scmp.ne.s32.totalorder %s40, %s43
      %p49 = scmp.eq.s32.totalorder %s30, 0
      %p50 = por %p48, %p49
      %p51 = scmp.ne.s32.totalorder %s40, %s43
      %p52 = scmp.eq.s32.totalorder %s35, 1
      %p53 = por %p51, %p52
      %p54 = scmp.ne.s32.totalorder %s43, %s44
      %p55 = scmp.eq.s32.totalorder %s35, 0
      %p56 = por %p54, %p55
      %p57 = scmp.ne.s32.totalorder %s43, %s44
      %p58 = scmp.eq.s32.totalorder %s36, 1
      %p59 = por %p57, %p58
      %p61 = scmp.ne.s32.totalorder %s44, %s60
      %p62 = scmp.eq.s32.totalorder %s36, 0
      %p63 = por %p61, %p62
      %s64 = ssub.s32 %s30, %s37
      %p65 = scmp.eq.s32.totalorder %s64, 0
      %s67 = sadd.s32 %s66, 1
      %s68 = scalar_select %p65, %s66, %s67
      %p71 = pneg %p65
      %p72 = scmp.eq.s32.totalorder %s30, 1
      %p73 = por %p71, %p72
      %p74 = scmp.ne.s32.totalorder %s66, %s69
      %p75 = scmp.eq.s32.totalorder %s30, 0
      %p76 = por %p74, %p75
      %p77 = scmp.ne.s32.totalorder %s66, %s69
      %p78 = scmp.eq.s32.totalorder %s35, 1
      %p79 = por %p77, %p78
      %p80 = scmp.ne.s32.totalorder %s69, %s70
      %p81 = scmp.eq.s32.totalorder %s35, 0
      %p82 = por %p80, %p81
      %p83 = scmp.ne.s32.totalorder %s69, %s70
      %p84 = scmp.eq.s32.totalorder %s36, 1
      %p85 = por %p83, %p84
      %p87 = scmp.ne.s32.totalorder %s70, %s86
      %p88 = scmp.eq.s32.totalorder %s36, 0
      %p89 = por %p87, %p88
      %s90 = ssub.s32 %s30, %s37
      %p91 = scmp.eq.s32.totalorder %s90, 0
      %s93 = sadd.s32 %s92, 1
      %s94 = scalar_select %p91, %s92, %s93
      %p97 = pneg %p91
      %p98 = scmp.eq.s32.totalorder %s30, 1
      %p99 = por %p97, %p98
      %p100 = scmp.ne.s32.totalorder %s92, %s95
      %p101 = scmp.eq.s32.totalorder %s30, 0
      %p102 = por %p100, %p101
      %p103 = scmp.ne.s32.totalorder %s92, %s95
      %p104 = scmp.eq.s32.totalorder %s35, 1
      %p105 = por %p103, %p104
      %p106 = scmp.ne.s32.totalorder %s95, %s96
      %p107 = scmp.eq.s32.totalorder %s35, 0
      %p108 = por %p106, %p107
      %p109 = scmp.ne.s32.totalorder %s95, %s96
      %p110 = scmp.eq.s32.totalorder %s36, 1
      %p111 = por %p109, %p110
      %p113 = scmp.ne.s32.totalorder %s96, %s112
      %p114 = scmp.eq.s32.totalorder %s36, 0
      %p115 = por %p113, %p114
      %s116 = ssub.s32 %s30, %s37
      %p117 = scmp.eq.s32.totalorder %s116, 0
      %s119 = sadd.s32 %s118, 1
      %s120 = scalar_select %p117, %s118, %s119
      %p123 = pneg %p117
      %p124 = scmp.eq.s32.totalorder %s30, 1
      %p125 = por %p123, %p124
      %p126 = scmp.ne.s32.totalorder %s118, %s121
      %p127 = scmp.eq.s32.totalorder %s30, 0
      %p128 = por %p126, %p127
      %p129 = scmp.ne.s32.totalorder %s118, %s121
      %p130 = scmp.eq.s32.totalorder %s35, 1
      %p131 = por %p129, %p130
      %p132 = scmp.ne.s32.totalorder %s121, %s122
      %p133 = scmp.eq.s32.totalorder %s35, 0
      %p134 = por %p132, %p133
      %p135 = scmp.ne.s32.totalorder %s121, %s122
      %p136 = scmp.eq.s32.totalorder %s36, 1
      %p137 = por %p135, %p136
      %p139 = scmp.ne.s32.totalorder %s122, %s138
      %p140 = scmp.eq.s32.totalorder %s36, 0
      %p141 = por %p139, %p140
      %s142 = ssub.s32 %s30, %s37
      %p143 = scmp.eq.s32.totalorder %s142, 0
      %s145 = sadd.s32 %s144, 1
      %s146 = scalar_select %p143, %s144, %s145
      %p149 = pneg %p143
      %p150 = scmp.eq.s32.totalorder %s30, 1
      %p151 = por %p149, %p150
      %p152 = scmp.ne.s32.totalorder %s144, %s147
      %p153 = scmp.eq.s32.totalorder %s30, 0
      %p154 = por %p152, %p153
      %p155 = scmp.ne.s32.totalorder %s144, %s147
      %p156 = scmp.eq.s32.totalorder %s35, 1
      %p157 = por %p155, %p156
      %p158 = scmp.ne.s32.totalorder %s147, %s148
      %p159 = scmp.eq.s32.totalorder %s35, 0
      %p160 = por %p158, %p159
      %p161 = scmp.ne.s32.totalorder %s147, %s148
      %p162 = scmp.eq.s32.totalorder %s36, 1
      %p163 = por %p161, %p162
      %p165 = scmp.ne.s32.totalorder %s148, %s164
      %p166 = scmp.eq.s32.totalorder %s36, 0
      %p167 = por %p165, %p166
      %s169 = sadd.s32 %s168, 1
      %p172 = scmp.eq.s32.totalorder %s30, 1
      %p173 = scmp.ne.s32.totalorder %s168, %s170
      %p174 = scmp.eq.s32.totalorder %s30, 0
      %p175 = por %p173, %p174
      %p176 = scmp.ne.s32.totalorder %s168, %s170
      %p177 = scmp.eq.s32.totalorder %s35, 1
      %p178 = por %p176, %p177
      %p179 = scmp.ne.s32.totalorder %s170, %s171
      %p180 = scmp.eq.s32.totalorder %s35, 0
      %p181 = por %p179, %p180
      %p182 = scmp.ne.s32.totalorder %s170, %s171
      %p183 = scmp.eq.s32.totalorder %s36, 1
      %p184 = por %p182, %p183
      %p186 = scmp.ne.s32.totalorder %s171, %s185
      %p187 = scmp.eq.s32.totalorder %s36, 0
      %p188 = por %p186, %p187
      %s190 = sadd.s32 %s189, 1
      %p193 = scmp.eq.s32.totalorder %s30, 1
      %p194 = scmp.ne.s32.totalorder %s189, %s191
      %p195 = scmp.eq.s32.totalorder %s30, 0
      %p196 = por %p194, %p195
      %p197 = scmp.ne.s32.totalorder %s189, %s191
      %p198 = scmp.eq.s32.totalorder %s35, 1
      %p199 = por %p197, %p198
      %p200 = scmp.ne.s32.totalorder %s191, %s192
      %p201 = scmp.eq.s32.totalorder %s35, 0
      %p202 = por %p200, %p201
      %p203 = scmp.ne.s32.totalorder %s191, %s192
      %p204 = scmp.eq.s32.totalorder %s36, 1
      %p205 = por %p203, %p204
      %p207 = scmp.ne.s32.totalorder %s192, %s206
      %p208 = scmp.eq.s32.totalorder %s36, 0
      %p209 = por %p207, %p208
      %s211 = sadd.s32 %s210, 1
      %p214 = scmp.eq.s32.totalorder %s30, 1
      %p215 = scmp.ne.s32.totalorder %s210, %s212
      %p216 = scmp.eq.s32.totalorder %s30, 0
      %p217 = por %p215, %p216
      %p218 = scmp.ne.s32.totalorder %s210, %s212
      %p219 = scmp.eq.s32.totalorder %s35, 1
      %p220 = por %p218, %p219
      %p221 = scmp.ne.s32.totalorder %s212, %s213
      %p222 = scmp.eq.s32.totalorder %s35, 0
      %p223 = por %p221, %p222
      %p224 = scmp.ne.s32.totalorder %s212, %s213
      %p225 = scmp.eq.s32.totalorder %s36, 1
      %p226 = por %p224, %p225
      %p228 = scmp.ne.s32.totalorder %s213, %s227
      %p229 = scmp.eq.s32.totalorder %s36, 0
      %p230 = por %p228, %p229
      %s232 = sadd.s32 %s231, 1
      %p235 = scmp.eq.s32.totalorder %s30, 1
      %p236 = scmp.ne.s32.totalorder %s231, %s233
      %p237 = scmp.eq.s32.totalorder %s30, 0
      %p238 = por %p236, %p237
      %p239 = scmp.ne.s32.totalorder %s231, %s233
      %p240 = scmp.eq.s32.totalorder %s35, 1
      %p241 = por %p239, %p240
      %p242 = scmp.ne.s32.totalorder %s233, %s234
      %p243 = scmp.eq.s32.totalorder %s35, 0
      %p244 = por %p242, %p243
      %p245 = scmp.ne.s32.totalorder %s233, %s234
      %p246 = scmp.eq.s32.totalorder %s36, 1
      %p247 = por %p245, %p246
      %p249 = scmp.ne.s32.totalorder %s234, %s248
      %p250 = scmp.eq.s32.totalorder %s36, 0
      %p251 = por %p249, %p250
      %s253 = sadd.s32 %s252, 1
      %p256 = scmp.eq.s32.totalorder %s30, 1
      %p257 = scmp.ne.s32.totalorder %s252, %s254
      %p258 = scmp.eq.s32.totalorder %s30, 0
      %p259 = por %p257, %p258
      %p260 = scmp.ne.s32.totalorder %s252, %s254
      %p261 = scmp.eq.s32.totalorder %s35, 1
      %p262 = por %p260, %p261
      %p263 = scmp.ne.s32.totalorder %s254, %s255
      %p264 = scmp.eq.s32.totalorder %s35, 0
      %p265 = por %p263, %p264
      %p266 = scmp.ne.s32.totalorder %s254, %s255
      %p267 = scmp.eq.s32.totalorder %s36, 1
      %p268 = por %p266, %p267
      %p270 = scmp.ne.s32.totalorder %s255, %s269
      %p271 = scmp.eq.s32.totalorder %s36, 0
      %p272 = por %p270, %p271
      %s274 = sadd.s32 %s273, 1
      %p277 = scmp.eq.s32.totalorder %s30, 1
      %p278 = scmp.ne.s32.totalorder %s273, %s275
      %p279 = scmp.eq.s32.totalorder %s30, 0
      %p280 = por %p278, %p279
      %p281 = scmp.ne.s32.totalorder %s273, %s275
      %p282 = scmp.eq.s32.totalorder %s35, 1
      %p283 = por %p281, %p282
      %p284 = scmp.ne.s32.totalorder %s275, %s276
      %p285 = scmp.eq.s32.totalorder %s35, 0
      %p286 = por %p284, %p285
      %p287 = scmp.ne.s32.totalorder %s275, %s276
      %p288 = scmp.eq.s32.totalorder %s36, 1
      %p289 = por %p287, %p288
      %p291 = scmp.ne.s32.totalorder %s276, %s290
      %p292 = scmp.eq.s32.totalorder %s36, 0
      %p293 = por %p291, %p292
      %s295 = sadd.s32 %s294, 1
      %p298 = scmp.eq.s32.totalorder %s30, 1
      %p299 = scmp.ne.s32.totalorder %s294, %s296
      %p300 = scmp.eq.s32.totalorder %s30, 0
      %p301 = por %p299, %p300
      %p302 = scmp.ne.s32.totalorder %s294, %s296
      %p303 = scmp.eq.s32.totalorder %s35, 1
      %p304 = por %p302, %p303
      %p305 = scmp.ne.s32.totalorder %s296, %s297
      %p306 = scmp.eq.s32.totalorder %s35, 0
      %p307 = por %p305, %p306
      %p308 = scmp.ne.s32.totalorder %s296, %s297
      %p309 = scmp.eq.s32.totalorder %s36, 1
      %p310 = por %p308, %p309
      %p312 = scmp.ne.s32.totalorder %s297, %s311
      %p313 = scmp.eq.s32.totalorder %s36, 0
      %p314 = por %p312, %p313
      %s316 = sadd.s32 %s315, 1
      %p319 = scmp.eq.s32.totalorder %s30, 1
      %p320 = scmp.ne.s32.totalorder %s315, %s317
      %p321 = scmp.eq.s32.totalorder %s30, 0
      %p322 = por %p320, %p321
      %p323 = scmp.ne.s32.totalorder %s315, %s317
      %p324 = scmp.eq.s32.totalorder %s35, 1
      %p325 = por %p323, %p324
      %p326 = scmp.ne.s32.totalorder %s317, %s318
      %p327 = scmp.eq.s32.totalorder %s35, 0
      %p328 = por %p326, %p327
      %p329 = scmp.ne.s32.totalorder %s317, %s318
      %p330 = scmp.eq.s32.totalorder %s36, 1
      %p331 = por %p329, %p330
      %p333 = scmp.ne.s32.totalorder %s318, %s332
      %p334 = scmp.eq.s32.totalorder %s36, 0
      %p335 = por %p333, %p334
      %s337 = sadd.s32 %s336, 1
      %p340 = scmp.eq.s32.totalorder %s30, 1
      %p341 = scmp.ne.s32.totalorder %s336, %s338
      %p342 = scmp.eq.s32.totalorder %s30, 0
      %p343 = por %p341, %p342
      %p344 = scmp.ne.s32.totalorder %s336, %s338
      %p345 = scmp.eq.s32.totalorder %s35, 1
      %p346 = por %p344, %p345
      %p347 = scmp.ne.s32.totalorder %s338, %s339
      %p348 = scmp.eq.s32.totalorder %s35, 0
      %p349 = por %p347, %p348
      %p350 = scmp.ne.s32.totalorder %s338, %s339
      %p351 = scmp.eq.s32.totalorder %s36, 1
      %p352 = por %p350, %p351
      %p354 = scmp.ne.s32.totalorder %s339, %s353
      %p355 = scmp.eq.s32.totalorder %s36, 0
      %p356 = por %p354, %p355
      %s358 = sadd.s32 %s357, 1
      %p361 = scmp.eq.s32.totalorder %s30, 1
      %p362 = scmp.ne.s32.totalorder %s357, %s359
      %p363 = scmp.eq.s32.totalorder %s30, 0
      %p364 = por %p362, %p363
      %p365 = scmp.ne.s32.totalorder %s357, %s359
      %p366 = scmp.eq.s32.totalorder %s35, 1
      %p367 = por %p365, %p366
      %p368 = scmp.ne.s32.totalorder %s359, %s360
      %p369 = scmp.eq.s32.totalorder %s35, 0
      %p370 = por %p368, %p369
      %p371 = scmp.ne.s32.totalorder %s359, %s360
      %p372 = scmp.eq.s32.totalorder %s36, 1
      %p373 = por %p371, %p372
      %p375 = scmp.ne.s32.totalorder %s360, %s374
      %p376 = scmp.eq.s32.totalorder %s36, 0
      %p377 = por %p375, %p376
      %s379 = sadd.s32 %s378, 1
      %p382 = scmp.eq.s32.totalorder %s30, 1
      %p383 = scmp.ne.s32.totalorder %s378, %s380
      %p384 = scmp.eq.s32.totalorder %s30, 0
      %p385 = por %p383, %p384
      %p386 = scmp.ne.s32.totalorder %s378, %s380
      %p387 = scmp.eq.s32.totalorder %s35, 1
      %p388 = por %p386, %p387
      %p389 = scmp.ne.s32.totalorder %s380, %s381
      %p390 = scmp.eq.s32.totalorder %s35, 0
      %p391 = por %p389, %p390
      %p392 = scmp.ne.s32.totalorder %s380, %s381
      %p393 = scmp.eq.s32.totalorder %s36, 1
      %p394 = por %p392, %p393
      %p396 = scmp.ne.s32.totalorder %s381, %s395
      %p397 = scmp.eq.s32.totalorder %s36, 0
      %p398 = por %p396, %p397
      %s400 = sadd.s32 %s399, 1
      %p403 = scmp.eq.s32.totalorder %s30, 1
      %p404 = scmp.ne.s32.totalorder %s399, %s401
      %p405 = scmp.eq.s32.totalorder %s30, 0
      %p406 = por %p404, %p405
      %p407 = scmp.ne.s32.totalorder %s399, %s401
      %p408 = scmp.eq.s32.totalorder %s35, 1
      %p409 = por %p407, %p408
      %p410 = scmp.ne.s32.totalorder %s401, %s402
      %p411 = scmp.eq.s32.totalorder %s35, 0
      %p412 = por %p410, %p411
      %p413 = scmp.ne.s32.totalorder %s401, %s402
      %p414 = scmp.eq.s32.totalorder %s36, 1
      %p415 = por %p413, %p414
      %p417 = scmp.ne.s32.totalorder %s402, %s416
      %p418 = scmp.eq.s32.totalorder %s36, 0
      %p419 = por %p417, %p418
      %s421 = sadd.s32 %s420, 1
      %p424 = scmp.eq.s32.totalorder %s30, 1
      %p425 = scmp.ne.s32.totalorder %s420, %s422
      %p426 = scmp.eq.s32.totalorder %s30, 0
      %p427 = por %p425, %p426
      %p428 = scmp.ne.s32.totalorder %s420, %s422
      %p429 = scmp.eq.s32.totalorder %s35, 1
      %p430 = por %p428, %p429
      %p431 = scmp.ne.s32.totalorder %s422, %s423
      %p432 = scmp.eq.s32.totalorder %s35, 0
      %p433 = por %p431, %p432
      %p434 = scmp.ne.s32.totalorder %s422, %s423
      %p435 = scmp.eq.s32.totalorder %s36, 1
      %p436 = por %p434, %p435
      %p438 = scmp.ne.s32.totalorder %s423, %s437
      %p439 = scmp.eq.s32.totalorder %s36, 0
      %p440 = por %p438, %p439
      %s442 = sadd.s32 %s441, 1
      %p445 = scmp.eq.s32.totalorder %s30, 1
      %p446 = scmp.ne.s32.totalorder %s441, %s443
      %p447 = scmp.eq.s32.totalorder %s30, 0
      %p448 = por %p446, %p447
      %p449 = scmp.ne.s32.totalorder %s441, %s443
      %p450 = scmp.eq.s32.totalorder %s35, 1
      %p451 = por %p449, %p450
      %p452 = scmp.ne.s32.totalorder %s443, %s444
      %p453 = scmp.eq.s32.totalorder %s35, 0
      %p454 = por %p452, %p453
      %p455 = scmp.ne.s32.totalorder %s443, %s444
      %p456 = scmp.eq.s32.totalorder %s36, 1
      %p457 = por %p455, %p456
      %p459 = scmp.ne.s32.totalorder %s444, %s458
      %p460 = scmp.eq.s32.totalorder %s36, 0
      %p461 = por %p459, %p460
      %s463 = sadd.s32 %s462, 1
      %p466 = scmp.eq.s32.totalorder %s30, 1
      %p467 = scmp.ne.s32.totalorder %s462, %s464
      %p468 = scmp.eq.s32.totalorder %s30, 0
      %p469 = por %p467, %p468
      %p470 = scmp.ne.s32.totalorder %s462, %s464
      %p471 = scmp.eq.s32.totalorder %s35, 1
      %p472 = por %p470, %p471
      %p473 = scmp.ne.s32.totalorder %s464, %s465
      %p474 = scmp.eq.s32.totalorder %s35, 0
      %p475 = por %p473, %p474
      %p476 = scmp.ne.s32.totalorder %s464, %s465
      %p477 = scmp.eq.s32.totalorder %s36, 1
      %p478 = por %p476, %p477
      %p480 = scmp.ne.s32.totalorder %s465, %s479
      %p481 = scmp.eq.s32.totalorder %s36, 0
      %p482 = por %p480, %p481
      %s484 = sadd.s32 %s483, 1
      %p487 = scmp.eq.s32.totalorder %s30, 1
      %p488 = scmp.ne.s32.totalorder %s483, %s485
      %p489 = scmp.eq.s32.totalorder %s30, 0
      %p490 = por %p488, %p489
      %p491 = scmp.ne.s32.totalorder %s483, %s485
      %p492 = scmp.eq.s32.totalorder %s35, 1
      %p493 = por %p491, %p492
      %p494 = scmp.ne.s32.totalorder %s485, %s486
      %p495 = scmp.eq.s32.totalorder %s35, 0
      %p496 = por %p494, %p495
      %p497 = scmp.ne.s32.totalorder %s485, %s486
      %p498 = scmp.eq.s32.totalorder %s36, 1
      %p499 = por %p497, %p498
      %p501 = scmp.ne.s32.totalorder %s486, %s500
      %p502 = scmp.eq.s32.totalorder %s36, 0
      %p503 = por %p501, %p502
      %s504 = ssub.s32 %s30, %s37
      %p505 = scmp.eq.s32.totalorder %s504, 0
      %s507 = sadd.s32 %s506, 1
      %s508 = scalar_select %p505, %s506, %s507
      %p511 = pneg %p505
      %p512 = scmp.eq.s32.totalorder %s30, 1
      %p513 = por %p511, %p512
      %p514 = scmp.ne.s32.totalorder %s506, %s509
      %p515 = scmp.eq.s32.totalorder %s30, 0
      %p516 = por %p514, %p515
      %p517 = scmp.ne.s32.totalorder %s506, %s509
      %p518 = scmp.eq.s32.totalorder %s35, 1
      %p519 = por %p517, %p518
      %p520 = scmp.ne.s32.totalorder %s509, %s510
      %p521 = scmp.eq.s32.totalorder %s35, 0
      %p522 = por %p520, %p521
      %p523 = scmp.ne.s32.totalorder %s509, %s510
      %p524 = scmp.eq.s32.totalorder %s36, 1
      %p525 = por %p523, %p524
      %p527 = scmp.ne.s32.totalorder %s510, %s526
      %p528 = scmp.eq.s32.totalorder %s36, 0
      %p529 = por %p527, %p528
      %p530 = scmp.le.s32.totalorder 1, %s30
      %p531 = scmp.lt.s32.totalorder %s30, 3
      %p532 = pnand %p530, %p531
      %p533 = pneg %p532
      // Predicated region
      $region9: #{discriminator_gcb_forward.1} parent=5 // pred_check
        _
      $region10: #{discriminator_gcb_forward.1} parent=5 // pred_check_branch
        %535 = sbr.rel (%p532) target = $region12
      $region11: #{discriminator_gcb_forward.1} parent=5 // pred_region
        %s536 = ssub.s32 %s30, 1
        // Predicated region
        $region13: #{discriminator_gcb_forward.1} parent=11 // pred_check
          %p537 = pneg %p181
        $region14: #{discriminator_gcb_forward.1} parent=11 // pred_check_branch
          %539 = sbr.rel (%p537) target = $region16
        $region15: #{discriminator_gcb_forward.1} parent=11 // pred_region
          _
        $region16: #{discriminator_gcb_forward.1} parent=11 // pred_fallthru
          _
        // Predicated region
        $region17: #{discriminator_gcb_forward.1} parent=11 // pred_check
          %p540 = pneg %p202
        $region18: #{discriminator_gcb_forward.1} parent=11 // pred_check_branch
          %542 = sbr.rel (%p540) target = $region20
        $region19: #{discriminator_gcb_forward.1} parent=11 // pred_region
          _
        $region20: #{discriminator_gcb_forward.1} parent=11 // pred_fallthru
          _
        // Predicated region
        $region21: #{discriminator_gcb_forward.1} parent=11 // pred_check
          %p543 = pneg %p223
        $region22: #{discriminator_gcb_forward.1} parent=11 // pred_check_branch
          %545 = sbr.rel (%p543) target = $region24
        $region23: #{discriminator_gcb_forward.1} parent=11 // pred_region
          _
        $region24: #{discriminator_gcb_forward.1} parent=11 // pred_fallthru
          _
        // Predicated region
        $region25: #{discriminator_gcb_forward.1} parent=11 // pred_check
          %p546 = pneg %p244
        $region26: #{discriminator_gcb_forward.1} parent=11 // pred_check_branch
          %548 = sbr.rel (%p546) target = $region28
        $region27: #{discriminator_gcb_forward.1} parent=11 // pred_region
          _
        $region28: #{discriminator_gcb_forward.1} parent=11 // pred_fallthru
          _
        // Predicated region
        $region29: #{discriminator_gcb_forward.1} parent=11 // pred_check
          %p549 = pneg %p265
        $region30: #{discriminator_gcb_forward.1} parent=11 // pred_check_branch
          %551 = sbr.rel (%p549) target = $region32
        $region31: #{discriminator_gcb_forward.1} parent=11 // pred_region
          _
        $region32: #{discriminator_gcb_forward.1} parent=11 // pred_fallthru
          _
        // Predicated region
        $region33: #{discriminator_gcb_forward.1} parent=11 // pred_check
          %p552 = pneg %p286
        $region34: #{discriminator_gcb_forward.1} parent=11 // pred_check_branch
          %554 = sbr.rel (%p552) target = $region36
        $region35: #{discriminator_gcb_forward.1} parent=11 // pred_region
          _
        $region36: #{discriminator_gcb_forward.1} parent=11 // pred_fallthru
          _
        // Predicated region
        $region37: #{discriminator_gcb_forward.1} parent=11 // pred_check
          %p555 = pneg %p307
        $region38: #{discriminator_gcb_forward.1} parent=11 // pred_check_branch
          %557 = sbr.rel (%p555) target = $region40
        $region39: #{discriminator_gcb_forward.1} parent=11 // pred_region
          _
        $region40: #{discriminator_gcb_forward.1} parent=11 // pred_fallthru
          _
        // Predicated region
        $region41: #{discriminator_gcb_forward.1} parent=11 // pred_check
          %p558 = pneg %p328
        $region42: #{discriminator_gcb_forward.1} parent=11 // pred_check_branch
          %560 = sbr.rel (%p558) target = $region44
        $region43: #{discriminator_gcb_forward.1} parent=11 // pred_region
          _
        $region44: #{discriminator_gcb_forward.1} parent=11 // pred_fallthru
          _
        // Predicated region
        $region45: #{discriminator_gcb_forward.1} parent=11 // pred_check
          %p561 = pneg %p349
        $region46: #{discriminator_gcb_forward.1} parent=11 // pred_check_branch
          %563 = sbr.rel (%p561) target = $region48
        $region47: #{discriminator_gcb_forward.1} parent=11 // pred_region
          _
        $region48: #{discriminator_gcb_forward.1} parent=11 // pred_fallthru
          _
        // Predicated region
        $region49: #{discriminator_gcb_forward.1} parent=11 // pred_check
          %p564 = pneg %p370
        $region50: #{discriminator_gcb_forward.1} parent=11 // pred_check_branch
          %566 = sbr.rel (%p564) target = $region52
        $region51: #{discriminator_gcb_forward.1} parent=11 // pred_region
          _
        $region52: #{discriminator_gcb_forward.1} parent=11 // pred_fallthru
          _
        // Predicated region
        $region53: #{discriminator_gcb_forward.1} parent=11 // pred_check
          %p567 = pneg %p391
        $region54: #{discriminator_gcb_forward.1} parent=11 // pred_check_branch
          %569 = sbr.rel (%p567) target = $region56
        $region55: #{discriminator_gcb_forward.1} parent=11 // pred_region
          _
        $region56: #{discriminator_gcb_forward.1} parent=11 // pred_fallthru
          _
        // Predicated region
        $region57: #{discriminator_gcb_forward.1} parent=11 // pred_check
          %p570 = pneg %p412
        $region58: #{discriminator_gcb_forward.1} parent=11 // pred_check_branch
          %572 = sbr.rel (%p570) target = $region60
        $region59: #{discriminator_gcb_forward.1} parent=11 // pred_region
          _
        $region60: #{discriminator_gcb_forward.1} parent=11 // pred_fallthru
          _
        // Predicated region
        $region61: #{discriminator_gcb_forward.1} parent=11 // pred_check
          %p573 = pneg %p433
        $region62: #{discriminator_gcb_forward.1} parent=11 // pred_check_branch
          %575 = sbr.rel (%p573) target = $region64
        $region63: #{discriminator_gcb_forward.1} parent=11 // pred_region
          _
        $region64: #{discriminator_gcb_forward.1} parent=11 // pred_fallthru
          _
        // Predicated region
        $region65: #{discriminator_gcb_forward.1} parent=11 // pred_check
          %p576 = pneg %p454
        $region66: #{discriminator_gcb_forward.1} parent=11 // pred_check_branch
          %578 = sbr.rel (%p576) target = $region68
        $region67: #{discriminator_gcb_forward.1} parent=11 // pred_region
          _
        $region68: #{discriminator_gcb_forward.1} parent=11 // pred_fallthru
          _
        // Predicated region
        $region69: #{discriminator_gcb_forward.1} parent=11 // pred_check
          %p579 = pneg %p475
        $region70: #{discriminator_gcb_forward.1} parent=11 // pred_check_branch
          %581 = sbr.rel (%p579) target = $region72
        $region71: #{discriminator_gcb_forward.1} parent=11 // pred_region
          _
        $region72: #{discriminator_gcb_forward.1} parent=11 // pred_fallthru
          _
        // Predicated region
        $region73: #{discriminator_gcb_forward.1} parent=11 // pred_check
          %p582 = pneg %p496
        $region74: #{discriminator_gcb_forward.1} parent=11 // pred_check_branch
          %584 = sbr.rel (%p582) target = $region76
        $region75: #{discriminator_gcb_forward.1} parent=11 // pred_region
          _
        $region76: #{discriminator_gcb_forward.1} parent=11 // pred_fallthru
          _
      $region12: #{discriminator_gcb_forward.1} parent=5 // pred_fallthru
        _
      %p585 = scmp.lt.s32.totalorder %s30, 2
      // Predicated region
      $region77: #{discriminator_gcb_forward.1} parent=5 // pred_check
        %p586 = pneg %p585
      $region78: #{discriminator_gcb_forward.1} parent=5 // pred_check_branch
        %588 = sbr.rel (%p586) target = $region80
      $region79: #{discriminator_gcb_forward.1} parent=5 // pred_region
        // Predicated region
        $region81: #{discriminator_gcb_forward.1} parent=79 // pred_check
          %p589 = pneg %p50
        $region82: #{discriminator_gcb_forward.1} parent=79 // pred_check_branch
          %591 = sbr.rel (%p589) target = $region84
        $region83: #{discriminator_gcb_forward.1} parent=79 // pred_region
          %p592 = scmp.lt.s32.totalorder %s30, 1
          %s593 = scalar_select %p592, %s30, 1
          %s594 = smul.addr %s593, 2
          %s595 = smul.addr %s594, 8
          %s596 = scalar_lea.vmem %s0, %s595
        $region84: #{discriminator_gcb_forward.1} parent=79 // pred_fallthru
          _
        // Predicated region
        $region85: #{discriminator_gcb_forward.1} parent=79 // pred_check
          %p597 = pneg %p76
        $region86: #{discriminator_gcb_forward.1} parent=79 // pred_check_branch
          %599 = sbr.rel (%p597) target = $region88
        $region87: #{discriminator_gcb_forward.1} parent=79 // pred_region
          %p600 = scmp.lt.s32.totalorder %s30, 1
          %s601 = scalar_select %p600, %s30, 1
          %s602 = scalar_lea.vmem %s1, %s601
        $region88: #{discriminator_gcb_forward.1} parent=79 // pred_fallthru
          _
        // Predicated region
        $region89: #{discriminator_gcb_forward.1} parent=79 // pred_check
          %p603 = pneg %p102
        $region90: #{discriminator_gcb_forward.1} parent=79 // pred_check_branch
          %605 = sbr.rel (%p603) target = $region92
        $region91: #{discriminator_gcb_forward.1} parent=79 // pred_region
          %p606 = scmp.lt.s32.totalorder %s30, 1
          %s607 = scalar_select %p606, %s30, 1
          %s608 = smul.addr %s607, 2
          %s609 = smul.addr %s608, 8
          %s610 = scalar_lea.vmem %s2, %s609
        $region92: #{discriminator_gcb_forward.1} parent=79 // pred_fallthru
          _
        // Predicated region
        $region93: #{discriminator_gcb_forward.1} parent=79 // pred_check
          %p611 = pneg %p128
        $region94: #{discriminator_gcb_forward.1} parent=79 // pred_check_branch
          %613 = sbr.rel (%p611) target = $region96
        $region95: #{discriminator_gcb_forward.1} parent=79 // pred_region
          %p614 = scmp.lt.s32.totalorder %s30, 1
          %s615 = scalar_select %p614, %s30, 1
          %s616 = smul.addr %s615, 2
          %s617 = smul.addr %s616, 8
          %s618 = scalar_lea.vmem %s3, %s617
        $region96: #{discriminator_gcb_forward.1} parent=79 // pred_fallthru
          _
        // Predicated region
        $region97: #{discriminator_gcb_forward.1} parent=79 // pred_check
          %p619 = pneg %p154
        $region98: #{discriminator_gcb_forward.1} parent=79 // pred_check_branch
          %621 = sbr.rel (%p619) target = $region100
        $region99: #{discriminator_gcb_forward.1} parent=79 // pred_region
          %p622 = scmp.lt.s32.totalorder %s30, 1
          %s623 = scalar_select %p622, %s30, 1
          %s624 = smul.addr %s623, 2
          %s625 = smul.addr %s624, 8
          %s626 = scalar_lea.vmem %s4, %s625
        $region100: #{discriminator_gcb_forward.1} parent=79 // pred_fallthru
          _
      $region80: #{discriminator_gcb_forward.1} parent=5 // pred_fallthru
        _
      %p627 = scmp.le.s32.totalorder 1, %s30
      %p628 = scmp.lt.s32.totalorder %s30, 3
      %p629 = pnand %p627, %p628
      %p630 = pneg %p629
      // Predicated region
      $region101: #{discriminator_gcb_forward.1} parent=5 // pred_check
        _
      $region102: #{discriminator_gcb_forward.1} parent=5 // pred_check_branch
        %632 = sbr.rel (%p629) target = $region104
      $region103: #{discriminator_gcb_forward.1} parent=5 // pred_region
        %s633 = ssub.s32 %s30, 1
        %p634 = scmp.lt.s32.totalorder %s35, 1
        %s635 = scalar_select %p634, %s35, 1
        %s636 = smul.addr %s635, 2
        %s637 = smul.addr %s636, 8
        %s638 = scalar_lea.vmem %s0, %s637
        %p639 = pneg %p56
        %p640 = pneg %p53
        %p641 = scmp.lt.s32.totalorder %s35, 1
        %s642 = scalar_select %p641, %s35, 1
        %s643 = scalar_lea.vmem %s1, %s642
        %p644 = pneg %p82
        %p645 = pneg %p79
        %p646 = scmp.lt.s32.totalorder %s35, 1
        %s647 = scalar_select %p646, %s35, 1
        %s648 = smul.addr %s647, 2
        %s649 = smul.addr %s648, 8
        %s650 = scalar_lea.vmem %s2, %s649
        %p651 = pneg %p108
        %p652 = pneg %p105
        %p653 = scmp.lt.s32.totalorder %s35, 1
        %s654 = scalar_select %p653, %s35, 1
        %s655 = smul.addr %s654, 2
        %s656 = smul.addr %s655, 8
        %s657 = scalar_lea.vmem %s3, %s656
        %p658 = pneg %p134
        %p659 = pneg %p131
        %p660 = scmp.lt.s32.totalorder %s35, 1
        %s661 = scalar_select %p660, %s35, 1
        %s662 = smul.addr %s661, 2
        %s663 = smul.addr %s662, 8
        %s664 = scalar_lea.vmem %s4, %s663
        %p665 = pneg %p160
        %p666 = pneg %p157
        %p667 = pneg %p181
        %p668 = pneg %p178
        %p669 = pneg %p202
        %p670 = pneg %p199
        %p671 = pneg %p223
        %p672 = pneg %p220
        %p673 = pneg %p244
        %p674 = pneg %p241
        %p675 = pneg %p265
        %p676 = pneg %p262
        %p677 = pneg %p286
        %p678 = pneg %p283
        %p679 = pneg %p307
        %p680 = pneg %p304
        %p681 = pneg %p328
        %p682 = pneg %p325
        %p683 = pneg %p349
        %p684 = pneg %p346
        %p685 = pneg %p370
        %p686 = pneg %p367
        %p687 = pneg %p391
        %p688 = pneg %p388
        %p689 = pneg %p412
        %p690 = pneg %p409
        %p691 = pneg %p433
        %p692 = pneg %p430
        %p693 = pneg %p454
        %p694 = pneg %p451
        %p695 = pneg %p475
        %p696 = pneg %p472
        %p697 = pneg %p496
        %p698 = pneg %p493
        %p699 = pneg %p522
        %p700 = pneg %p519
        %s701 = sand.u32 %s509, 1
        %s702 = scalar_lea.sflag [#allocation3], %s701
        %s703 = sand.u32 %s509, 1
        %s704 = scalar_lea.vmem [#allocation2], %s703
        %p705 = scmp.lt.s32.totalorder %s35, 1
        %s706 = scalar_select %p705, %s35, 1
        %s707 = smul.addr %s706, 2
        %s708 = smul.addr %s707, 8
        %s709 = scalar_lea.vmem %s0, %s708
        %p710 = scmp.lt.s32.totalorder %s35, 1
        %s711 = scalar_select %p710, %s35, 1
        %s712 = scalar_lea.vmem %s1, %s711
        %p713 = scmp.lt.s32.totalorder %s35, 1
        %s714 = scalar_select %p713, %s35, 1
        %s715 = smul.addr %s714, 2
        %s716 = smul.addr %s715, 8
        %s717 = scalar_lea.vmem %s2, %s716
        %p718 = scmp.lt.s32.totalorder %s35, 1
        %s719 = scalar_select %p718, %s35, 1
        %s720 = smul.addr %s719, 2
        %s721 = smul.addr %s720, 8
        %s722 = scalar_lea.vmem %s3, %s721
        %p723 = scmp.lt.s32.totalorder %s35, 1
        %s724 = scalar_select %p723, %s35, 1
        %s725 = smul.addr %s724, 2
        %s726 = smul.addr %s725, 8
        %s727 = scalar_lea.vmem %s4, %s726
        %v729 = vld [vmem:[%s709] sm:$0xff]
        %v730 = vld [vmem:[%s709 + $0x8] sm:$0xff]
        %v731 = vld [vmem:[%s712] sm:$0x1]
        %v732 = vld [vmem:[%s717] sm:$0xff]
        %v733 = vld [vmem:[%s717 + $0x8] sm:$0xff]
        %v734 = vld [vmem:[%s722] sm:$0xff]
        %v735 = vld [vmem:[%s722 + $0x8] sm:$0xff]
        %737 = vset.pattern.permute.xlu0 0
        %738 = vperm.xlu0 %737, %v729
        %v739 = vpop.permute.xlu0 %738
        %742 = vset.pattern.permute.xlu0 0
        %743 = vperm.xlu0 %742, %v730
        %v744 = vpop.permute.xlu0 %743
        %v747 = vlaneseq
        %v748 = vshrl.u32 %v747, 7
        %v749 = vsub.s32 0, %v748
        %v750 = vrot.slane %v731, %v749
        %v752 = vmul.f32 %v739, %v750
        %v753 = vmul.f32 %v744, %v750
        %v754 = vmul.f32 %v752, %v732
        %v755 = vmul.f32 %v753, %v733
        %vm756 = vcmask 130048
        %v757 = vsel %vm756, %v754, 0.0
        %758 = vadd.xlane.f32.xlu0 %v757
        %v759 = vpop.xlane.xlu0 %758
        %v760 = vsel %vm756, %v755, 0.0
        %761 = vadd.xlane.f32.xlu0 %v760
        %v762 = vpop.xlane.xlu0 %761
        %v763 = vadd.f32 %v759, 1e-10
        %v764 = vadd.f32 %v762, 1e-10
        %v765 = vrcp.pop %v763
        %v766 = vrcp.pop %v764
        %v767 = vmul.f32 %v754, %v765
        %v768 = vmul.f32 %v755, %v766
        %v769 = vpack.c.bf16 %v768, %v767
        %v770 = vpack.c.bf16 %v735, %v734
        %v772 = vsel %vm756, %v769, 0
        %774 = vmatprep.subr.bf16.mxu0 0
        %775 = vmatpush1.bf16.msra.mxu0 %v770
        %776 = vmatprep.subr.bf16.mxu0 0
        %777 = vmatpush1.bf16.msra.mxu0 0
        %778 = vmatprep.subr.bf16.mxu0 0
        %779 = vmatpush1.bf16.msra.mxu0 0
        %780 = vmatprep.subr.bf16.mxu0 0
        %781 = vmatpush1.bf16.msra.mxu0 0
        %782 = vmatprep.subr.bf16.mxu0 0
        %783 = vmatpush1.bf16.msra.mxu0 0
        %784 = vmatprep.subr.bf16.mxu0 0
        %785 = vmatpush1.bf16.msra.mxu0 0
        %786 = vmatprep.subr.bf16.mxu0 0
        %787 = vmatpush1.bf16.msra.mxu0 0
        %788 = vmatprep.subr.bf16.mxu0 0
        %789 = vmatpush1.bf16.msra.mxu0 0
        %790 = vmatprep.subr.bf16.mxu0 0
        %791 = vmatpush1.bf16.msra.mxu0 0
        %792 = vmatprep.subr.bf16.mxu0 0
        %793 = vmatpush1.bf16.msra.mxu0 0
        %794 = vmatprep.subr.bf16.mxu0 0
        %795 = vmatpush1.bf16.msra.mxu0 0
        %796 = vmatprep.subr.bf16.mxu0 0
        %797 = vmatpush1.bf16.msra.mxu0 0
        %798 = vmatprep.subr.bf16.mxu0 0
        %799 = vmatpush1.bf16.msra.mxu0 0
        %800 = vmatprep.subr.bf16.mxu0 0
        %801 = vmatpush1.bf16.msra.mxu0 0
        %802 = vmatprep.subr.bf16.mxu0 0
        %803 = vmatpush1.bf16.msra.mxu0 0
        %804 = vmatprep.subr.bf16.mxu0 0
        %805 = vmatpush1.bf16.msra.mxu0 0
        %806 = vmatprep.mubr.bf16.mxu0 0
        %807 = vmatmul.mubr.bf16.gmra.mrb[0].mxu0 %v772
        %v808 = vpop.f32.mrb[0].mxu0
        %v809 = vadd.f32 0.0, %v808
        %v810 = vpop.f32.mrb[0].mxu0
        %v811 = vpop.f32.mrb[0].mxu0
        %v812 = vadd.f32 0.0, %v811
        %v813 = vpop.f32.mrb[0].mxu0
        %814 = vdwg.mxu0
        %v815 = vsub.f32 1.0, %v729
        %v816 = vsub.f32 1.0, %v730
        %818 = vset.pattern.permute.xlu0 0
        %819 = vperm.xlu0 %818, %v815
        %v820 = vpop.permute.xlu0 %819
        %823 = vset.pattern.permute.xlu0 0
        %824 = vperm.xlu0 %823, %v816
        %v825 = vpop.permute.xlu0 %824
        %v827 = vmul.f32 %v734, %v820
        %v828 = vmul.f32 %v735, %v825
        %v829 = vmul.f32 %v809, %v739
        %v830 = vmul.f32 %v812, %v744
        %v831 = vadd.f32 %v827, %v829
        %v832 = vadd.f32 %v828, %v830
        %v833 = vld [vmem:[%s727] sm:$0xff]
        %v834 = vld [vmem:[%s727 + $0x8] sm:$0xff]
        %v835 = vadd.f32 %v831, %v833
        %v836 = vadd.f32 %v832, %v834
        %v837 = vld [vmem:[%s5] sm:$0x1]
        %v838 = vld [vmem:[%s6] sm:$0x1]
        %vm839 = vcmask 261120
        %v840 = vsel %vm839, %v835, 0.0
        %841 = vadd.xlane.f32.xlu0 %v840
        %v842 = vpop.xlane.xlu0 %841
        %v843 = vsel %vm839, %v836, 0.0
        %844 = vadd.xlane.f32.xlu0 %v843
        %v845 = vpop.xlane.xlu0 %844
        %v846 = vrcp.pop 32.0
        %v847 = vmul.f32 %v842, %v846
        %v848 = vmul.f32 %v845, %v846
        %v849 = vsub.f32 %v835, %v847
        %v850 = vsub.f32 %v836, %v848
        %v851 = vmul.f32 %v849, %v849
        %v852 = vmul.f32 %v850, %v850
        %v853 = vsel %vm839, %v851, 0.0
        %854 = vadd.xlane.f32.xlu0 %v853
        %v855 = vpop.xlane.xlu0 %854
        %v856 = vsel %vm839, %v852, 0.0
        %857 = vadd.xlane.f32.xlu0 %v856
        %v858 = vpop.xlane.xlu0 %857
        %v859 = vmul.f32 %v855, %v846
        %v860 = vmul.f32 %v858, %v846
        %v861 = vadd.f32 %v859, 1e-05
        %v862 = vadd.f32 %v860, 1e-05
        %v863 = vrsqrt.pop %v861
        %v864 = vrsqrt.pop %v862
        %v865 = vmul.f32 %v849, %v863
        %v866 = vmul.f32 %v850, %v864
        %v868 = vlaneseq
        %v869 = vshrl.u32 %v868, 7
        %v870 = vsub.s32 0, %v869
        %v871 = vrot.slane %v837, %v870
        %v873 = vmul.f32 %v865, %v871
        %v874 = vmul.f32 %v866, %v871
        %v876 = vlaneseq
        %v877 = vshrl.u32 %v876, 7
        %v878 = vsub.s32 0, %v877
        %v879 = vrot.slane %v838, %v878
        %v881 = vadd.f32 %v873, %v879
        %v882 = vadd.f32 %v874, %v879
        %v883 = vsub.f32 1.0, %v732
        %v884 = vsub.f32 1.0, %v733
        %v885 = vmul.f32 %v883, -10000.0
        %v886 = vmul.f32 %v884, -10000.0
        %v887 = vld [vmem:[%s7] sm:$0xff]
        %v888 = vld [vmem:[%s7 + $0x8] sm:$0xff]
        %v889 = vld [vmem:[%s7 + $0x10] sm:$0xff]
        %v890 = vld [vmem:[%s7 + $0x18] sm:$0xff]
        %v891 = vpack.c.bf16 %v882, %v881
        %v892 = vpack.c.bf16 %v888, %v887
        %v893 = vpack.c.bf16 %v890, %v889
        %v894 = vld [vmem:[%s8] sm:$0x1]
        %v896 = vlaneseq
        %v897 = vshrl.u32 %v896, 7
        %v898 = vsub.s32 0, %v897
        %v899 = vrot.slane %v894, %v898
        %v902 = vsel %vm839, %v891, 0
        %904 = vmatprep.subr.bf16.mxu0 0
        %905 = vmatpush1.bf16.msra.mxu0 %v892
        %906 = vmatprep.subr.bf16.mxu0 0
        %907 = vmatpush1.bf16.msra.mxu0 %v893
        %908 = vmatprep.subr.bf16.mxu0 0
        %909 = vmatpush1.bf16.msra.mxu0 0
        %910 = vmatprep.subr.bf16.mxu0 0
        %911 = vmatpush1.bf16.msra.mxu0 0
        %912 = vmatprep.subr.bf16.mxu0 0
        %913 = vmatpush1.bf16.msra.mxu0 0
        %914 = vmatprep.subr.bf16.mxu0 0
        %915 = vmatpush1.bf16.msra.mxu0 0
        %916 = vmatprep.subr.bf16.mxu0 0
        %917 = vmatpush1.bf16.msra.mxu0 0
        %918 = vmatprep.subr.bf16.mxu0 0
        %919 = vmatpush1.bf16.msra.mxu0 0
        %920 = vmatprep.subr.bf16.mxu0 0
        %921 = vmatpush1.bf16.msra.mxu0 0
        %922 = vmatprep.subr.bf16.mxu0 0
        %923 = vmatpush1.bf16.msra.mxu0 0
        %924 = vmatprep.subr.bf16.mxu0 0
        %925 = vmatpush1.bf16.msra.mxu0 0
        %926 = vmatprep.subr.bf16.mxu0 0
        %927 = vmatpush1.bf16.msra.mxu0 0
        %928 = vmatprep.subr.bf16.mxu0 0
        %929 = vmatpush1.bf16.msra.mxu0 0
        %930 = vmatprep.subr.bf16.mxu0 0
        %931 = vmatpush1.bf16.msra.mxu0 0
        %932 = vmatprep.subr.bf16.mxu0 0
        %933 = vmatpush1.bf16.msra.mxu0 0
        %934 = vmatprep.subr.bf16.mxu0 0
        %935 = vmatpush1.bf16.msra.mxu0 0
        %936 = vmatprep.mubr.bf16.mxu0 0
        %937 = vmatmul.mubr.bf16.gmra.mrb[0].mxu0 %v902
        %v938 = vpop.f32.mrb[0].mxu0
        %v939 = vadd.f32 %v899, %v938
        %v940 = vpop.f32.mrb[0].mxu0
        %v941 = vpop.f32.mrb[0].mxu0
        %v942 = vadd.f32 %v899, %v941
        %v943 = vpop.f32.mrb[0].mxu0
        %944 = vdwg.mxu0
        %v945 = vpack.c.bf16 %v942, %v939
        %947 = vrot.lane.b32.xlu0 %v945, 96
        %v948 = vpop.permute.xlu0 %947
        %vm949 = vcmask 64512
        %v951 = vsel %vm949, %v945, 0
        %v954 = vsel %vm949, %v948, 0
        %956 = vmatprep.subr.bf16.mxu0 0
        %957 = vmatpush1.bf16.xpose.msra.mxu0 %v954
        %958 = vmatprep.subr.bf16.mxu0 0
        %959 = vmatpush1.bf16.xpose.msra.mxu0 0
        %960 = vmatprep.subr.bf16.mxu0 0
        %961 = vmatpush1.bf16.xpose.msra.mxu0 0
        %962 = vmatprep.subr.bf16.mxu0 0
        %963 = vmatpush1.bf16.xpose.msra.mxu0 0
        %964 = vmatprep.subr.bf16.mxu0 0
        %965 = vmatpush1.bf16.xpose.msra.mxu0 0
        %966 = vmatprep.subr.bf16.mxu0 0
        %967 = vmatpush1.bf16.xpose.msra.mxu0 0
        %968 = vmatprep.subr.bf16.mxu0 0
        %969 = vmatpush1.bf16.xpose.msra.mxu0 0
        %970 = vmatprep.subr.bf16.mxu0 0
        %971 = vmatpush1.bf16.xpose.msra.mxu0 0
        %972 = vmatprep.subr.bf16.mxu0 0
        %973 = vmatpush1.bf16.xpose.msra.mxu0 0
        %974 = vmatprep.subr.bf16.mxu0 0
        %975 = vmatpush1.bf16.xpose.msra.mxu0 0
        %976 = vmatprep.subr.bf16.mxu0 0
        %977 = vmatpush1.bf16.xpose.msra.mxu0 0
        %978 = vmatprep.subr.bf16.mxu0 0
        %979 = vmatpush1.bf16.xpose.msra.mxu0 0
        %980 = vmatprep.subr.bf16.mxu0 0
        %981 = vmatpush1.bf16.xpose.msra.mxu0 0
        %982 = vmatprep.subr.bf16.mxu0 0
        %983 = vmatpush1.bf16.xpose.msra.mxu0 0
        %984 = vmatprep.subr.bf16.mxu0 0
        %985 = vmatpush1.bf16.xpose.msra.mxu0 0
        %986 = vmatprep.subr.bf16.mxu0 0
        %987 = vmatpush1.bf16.xpose.msra.mxu0 0
        %988 = vmatprep.mubr.bf16.mxu0 0
        %989 = vmatmul.mubr.bf16.gmra.mrb[0].mxu0 %v951
        %v990 = vpop.f32.mrb[0].mxu0
        %v991 = vadd.f32 0.0, %v990
        %v992 = vpop.f32.mrb[0].mxu0
        %v993 = vpop.f32.mrb[0].mxu0
        %v994 = vadd.f32 0.0, %v993
        %v995 = vpop.f32.mrb[0].mxu0
        %996 = vdwg.mxu0
        %v997 = vmul.f32 %v991, 0.35355338
        %v998 = vmul.f32 %v994, 0.35355338
        %v999 = vadd.f32 %v997, %v885
        %v1000 = vadd.f32 %v998, %v886
        %v1001 = vsel %vm756, %v999, -inf
        %1002 = vmax.xlane.f32.xlu0 %v1001
        %v1003 = vpop.xlane.xlu0 %1002
        %v1004 = vsel %vm756, %v1000, -inf
        %1005 = vmax.xlane.f32.xlu0 %v1004
        %v1006 = vpop.xlane.xlu0 %1005
        %v1007 = vsub.f32 %v999, %v1003
        %v1008 = vsub.f32 %v1000, %v1006
        %v1009 = vmul.f32 %v1007, 1.442695
        %v1010 = vpow.pop %v1009
        %v1011 = vmul.f32 %v1008, 1.442695
        %v1012 = vpow.pop %v1011
        %v1013 = vsel %vm756, %v1010, 0.0
        %1014 = vadd.xlane.f32.xlu0 %v1013
        %v1015 = vpop.xlane.xlu0 %1014
        %v1016 = vsel %vm756, %v1012, 0.0
        %1017 = vadd.xlane.f32.xlu0 %v1016
        %v1018 = vpop.xlane.xlu0 %1017
        %v1019 = vrcp.pop %v1015
        %v1020 = vrcp.pop %v1018
        %v1021 = vmul.f32 %v1010, %v1019
        %v1022 = vmul.f32 %v1012, %v1020
        %v1023 = vpack.c.bf16 %v1022, %v1021
        %1024 = vrot.lane.b32.xlu0 %v945, 64
        %v1025 = vpop.permute.xlu0 %1024
        %v1028 = vsel %vm756, %v1023, 0
        %1030 = vmatprep.subr.bf16.mxu0 0
        %1031 = vmatpush1.bf16.msra.mxu0 %v1025
        %1032 = vmatprep.subr.bf16.mxu0 0
        %1033 = vmatpush1.bf16.msra.mxu0 0
        %1034 = vmatprep.subr.bf16.mxu0 0
        %1035 = vmatpush1.bf16.msra.mxu0 0
        %1036 = vmatprep.subr.bf16.mxu0 0
        %1037 = vmatpush1.bf16.msra.mxu0 0
        %1038 = vmatprep.subr.bf16.mxu0 0
        %1039 = vmatpush1.bf16.msra.mxu0 0
        %1040 = vmatprep.subr.bf16.mxu0 0
        %1041 = vmatpush1.bf16.msra.mxu0 0
        %1042 = vmatprep.subr.bf16.mxu0 0
        %1043 = vmatpush1.bf16.msra.mxu0 0
        %1044 = vmatprep.subr.bf16.mxu0 0
        %1045 = vmatpush1.bf16.msra.mxu0 0
        %1046 = vmatprep.subr.bf16.mxu0 0
        %1047 = vmatpush1.bf16.msra.mxu0 0
        %1048 = vmatprep.subr.bf16.mxu0 0
        %1049 = vmatpush1.bf16.msra.mxu0 0
        %1050 = vmatprep.subr.bf16.mxu0 0
        %1051 = vmatpush1.bf16.msra.mxu0 0
        %1052 = vmatprep.subr.bf16.mxu0 0
        %1053 = vmatpush1.bf16.msra.mxu0 0
        %1054 = vmatprep.subr.bf16.mxu0 0
        %1055 = vmatpush1.bf16.msra.mxu0 0
        %1056 = vmatprep.subr.bf16.mxu0 0
        %1057 = vmatpush1.bf16.msra.mxu0 0
        %1058 = vmatprep.subr.bf16.mxu0 0
        %1059 = vmatpush1.bf16.msra.mxu0 0
        %1060 = vmatprep.subr.bf16.mxu0 0
        %1061 = vmatpush1.bf16.msra.mxu0 0
        %1062 = vmatprep.mubr.bf16.mxu0 0
        %1063 = vmatmul.mubr.bf16.gmra.mrb[0].mxu0 %v1028
        %v1064 = vpop.f32.mrb[0].mxu0
        %v1065 = vadd.f32 0.0, %v1064
        %v1066 = vpop.f32.mrb[0].mxu0
        %v1067 = vpop.f32.mrb[0].mxu0
        %v1068 = vadd.f32 0.0, %v1067
        %v1069 = vpop.f32.mrb[0].mxu0
        %1070 = vdwg.mxu0
        %1071 = vrot.lane.b32.xlu0 %v945, 120
        %v1072 = vpop.permute.xlu0 %1071
        %1073 = vrot.lane.b32.xlu0 %v945, 88
        %v1074 = vpop.permute.xlu0 %1073
        %v1076 = vsel %vm949, %v1072, 0
        %v1079 = vsel %vm949, %v1074, 0
        %1081 = vmatprep.subr.bf16.mxu0 0
        %1082 = vmatpush1.bf16.xpose.msra.mxu0 %v1079
        %1083 = vmatprep.subr.bf16.mxu0 0
        %1084 = vmatpush1.bf16.xpose.msra.mxu0 0
        %1085 = vmatprep.subr.bf16.mxu0 0
        %1086 = vmatpush1.bf16.xpose.msra.mxu0 0
        %1087 = vmatprep.subr.bf16.mxu0 0
        %1088 = vmatpush1.bf16.xpose.msra.mxu0 0
        %1089 = vmatprep.subr.bf16.mxu0 0
        %1090 = vmatpush1.bf16.xpose.msra.mxu0 0
        %1091 = vmatprep.subr.bf16.mxu0 0
        %1092 = vmatpush1.bf16.xpose.msra.mxu0 0
        %1093 = vmatprep.subr.bf16.mxu0 0
        %1094 = vmatpush1.bf16.xpose.msra.mxu0 0
        %1095 = vmatprep.subr.bf16.mxu0 0
        %1096 = vmatpush1.bf16.xpose.msra.mxu0 0
        %1097 = vmatprep.subr.bf16.mxu0 0
        %1098 = vmatpush1.bf16.xpose.msra.mxu0 0
        %1099 = vmatprep.subr.bf16.mxu0 0
        %1100 = vmatpush1.bf16.xpose.msra.mxu0 0
        %1101 = vmatprep.subr.bf16.mxu0 0
        %1102 = vmatpush1.bf16.xpose.msra.mxu0 0
        %1103 = vmatprep.subr.bf16.mxu0 0
        %1104 = vmatpush1.bf16.xpose.msra.mxu0 0
        %1105 = vmatprep.subr.bf16.mxu0 0
        %1106 = vmatpush1.bf16.xpose.msra.mxu0 0
        %1107 = vmatprep.subr.bf16.mxu0 0
        %1108 = vmatpush1.bf16.xpose.msra.mxu0 0
        %1109 = vmatprep.subr.bf16.mxu0 0
        %1110 = vmatpush1.bf16.xpose.msra.mxu0 0
        %1111 = vmatprep.subr.bf16.mxu0 0
        %1112 = vmatpush1.bf16.xpose.msra.mxu0 0
        %1113 = vmatprep.mubr.bf16.mxu0 0
        %1114 = vmatmul.mubr.bf16.gmra.mrb[0].mxu0 %v1076
        %v1115 = vpop.f32.mrb[0].mxu0
        %v1116 = vadd.f32 0.0, %v1115
        %v1117 = vpop.f32.mrb[0].mxu0
        %v1118 = vpop.f32.mrb[0].mxu0
        %v1119 = vadd.f32 0.0, %v1118
        %v1120 = vpop.f32.mrb[0].mxu0
        %1121 = vdwg.mxu0
        %v1122 = vmul.f32 %v1116, 0.35355338
        %v1123 = vmul.f32 %v1119, 0.35355338
        %v1124 = vadd.f32 %v1122, %v885
        %v1125 = vadd.f32 %v1123, %v886
        %v1126 = vsel %vm756, %v1124, -inf
        %1127 = vmax.xlane.f32.xlu0 %v1126
        %v1128 = vpop.xlane.xlu0 %1127
        %v1129 = vsel %vm756, %v1125, -inf
        %1130 = vmax.xlane.f32.xlu0 %v1129
        %v1131 = vpop.xlane.xlu0 %1130
        %v1132 = vsub.f32 %v1124, %v1128
        %v1133 = vsub.f32 %v1125, %v1131
        %v1134 = vmul.f32 %v1132, 1.442695
        %v1135 = vpow.pop %v1134
        %v1136 = vmul.f32 %v1133, 1.442695
        %v1137 = vpow.pop %v1136
        %v1138 = vsel %vm756, %v1135, 0.0
        %1139 = vadd.xlane.f32.xlu0 %v1138
        %v1140 = vpop.xlane.xlu0 %1139
        %v1141 = vsel %vm756, %v1137, 0.0
        %1142 = vadd.xlane.f32.xlu0 %v1141
        %v1143 = vpop.xlane.xlu0 %1142
        %v1144 = vrcp.pop %v1140
        %v1145 = vrcp.pop %v1143
        %v1146 = vmul.f32 %v1135, %v1144
        %v1147 = vmul.f32 %v1137, %v1145
        %v1148 = vpack.c.bf16 %v1147, %v1146
        %1149 = vrot.lane.b32.xlu0 %v945, 56
        %v1150 = vpop.permute.xlu0 %1149
        %v1153 = vsel %vm756, %v1148, 0
        %1155 = vmatprep.subr.bf16.mxu0 0
        %1156 = vmatpush1.bf16.msra.mxu0 %v1150
        %1157 = vmatprep.subr.bf16.mxu0 0
        %1158 = vmatpush1.bf16.msra.mxu0 0
        %1159 = vmatprep.subr.bf16.mxu0 0
        %1160 = vmatpush1.bf16.msra.mxu0 0
        %1161 = vmatprep.subr.bf16.mxu0 0
        %1162 = vmatpush1.bf16.msra.mxu0 0
        %1163 = vmatprep.subr.bf16.mxu0 0
        %1164 = vmatpush1.bf16.msra.mxu0 0
        %1165 = vmatprep.subr.bf16.mxu0 0
        %1166 = vmatpush1.bf16.msra.mxu0 0
        %1167 = vmatprep.subr.bf16.mxu0 0
        %1168 = vmatpush1.bf16.msra.mxu0 0
        %1169 = vmatprep.subr.bf16.mxu0 0
        %1170 = vmatpush1.bf16.msra.mxu0 0
        %1171 = vmatprep.subr.bf16.mxu0 0
        %1172 = vmatpush1.bf16.msra.mxu0 0
        %1173 = vmatprep.subr.bf16.mxu0 0
        %1174 = vmatpush1.bf16.msra.mxu0 0
        %1175 = vmatprep.subr.bf16.mxu0 0
        %1176 = vmatpush1.bf16.msra.mxu0 0
        %1177 = vmatprep.subr.bf16.mxu0 0
        %1178 = vmatpush1.bf16.msra.mxu0 0
        %1179 = vmatprep.subr.bf16.mxu0 0
        %1180 = vmatpush1.bf16.msra.mxu0 0
        %1181 = vmatprep.subr.bf16.mxu0 0
        %1182 = vmatpush1.bf16.msra.mxu0 0
        %1183 = vmatprep.subr.bf16.mxu0 0
        %1184 = vmatpush1.bf16.msra.mxu0 0
        %1185 = vmatprep.subr.bf16.mxu0 0
        %1186 = vmatpush1.bf16.msra.mxu0 0
        %1187 = vmatprep.mubr.bf16.mxu0 0
        %1188 = vmatmul.mubr.bf16.gmra.mrb[0].mxu0 %v1153
        %v1189 = vpop.f32.mrb[0].mxu0
        %v1190 = vadd.f32 0.0, %v1189
        %v1191 = vpop.f32.mrb[0].mxu0
        %v1192 = vpop.f32.mrb[0].mxu0
        %v1193 = vadd.f32 0.0, %v1192
        %v1194 = vpop.f32.mrb[0].mxu0
        %1195 = vdwg.mxu0
        %1196 = vrot.lane.b32.xlu0 %v945, 112
        %v1197 = vpop.permute.xlu0 %1196
        %1198 = vrot.lane.b32.xlu0 %v945, 80
        %v1199 = vpop.permute.xlu0 %1198
        %v1201 = vsel %vm949, %v1197, 0
        %v1204 = vsel %vm949, %v1199, 0
        %1206 = vmatprep.subr.bf16.mxu0 0
        %1207 = vmatpush1.bf16.xpose.msra.mxu0 %v1204
        %1208 = vmatprep.subr.bf16.mxu0 0
        %1209 = vmatpush1.bf16.xpose.msra.mxu0 0
        %1210 = vmatprep.subr.bf16.mxu0 0
        %1211 = vmatpush1.bf16.xpose.msra.mxu0 0
        %1212 = vmatprep.subr.bf16.mxu0 0
        %1213 = vmatpush1.bf16.xpose.msra.mxu0 0
        %1214 = vmatprep.subr.bf16.mxu0 0
        %1215 = vmatpush1.bf16.xpose.msra.mxu0 0
        %1216 = vmatprep.subr.bf16.mxu0 0
        %1217 = vmatpush1.bf16.xpose.msra.mxu0 0
        %1218 = vmatprep.subr.bf16.mxu0 0
        %1219 = vmatpush1.bf16.xpose.msra.mxu0 0
        %1220 = vmatprep.subr.bf16.mxu0 0
        %1221 = vmatpush1.bf16.xpose.msra.mxu0 0
        %1222 = vmatprep.subr.bf16.mxu0 0
        %1223 = vmatpush1.bf16.xpose.msra.mxu0 0
        %1224 = vmatprep.subr.bf16.mxu0 0
        %1225 = vmatpush1.bf16.xpose.msra.mxu0 0
        %1226 = vmatprep.subr.bf16.mxu0 0
        %1227 = vmatpush1.bf16.xpose.msra.mxu0 0
        %1228 = vmatprep.subr.bf16.mxu0 0
        %1229 = vmatpush1.bf16.xpose.msra.mxu0 0
        %1230 = vmatprep.subr.bf16.mxu0 0
        %1231 = vmatpush1.bf16.xpose.msra.mxu0 0
        %1232 = vmatprep.subr.bf16.mxu0 0
        %1233 = vmatpush1.bf16.xpose.msra.mxu0 0
        %1234 = vmatprep.subr.bf16.mxu0 0
        %1235 = vmatpush1.bf16.xpose.msra.mxu0 0
        %1236 = vmatprep.subr.bf16.mxu0 0
        %1237 = vmatpush1.bf16.xpose.msra.mxu0 0
        %1238 = vmatprep.mubr.bf16.mxu0 0
        %1239 = vmatmul.mubr.bf16.gmra.mrb[0].mxu0 %v1201
        %v1240 = vpop.f32.mrb[0].mxu0
        %v1241 = vadd.f32 0.0, %v1240
        %v1242 = vpop.f32.mrb[0].mxu0
        %v1243 = vpop.f32.mrb[0].mxu0
        %v1244 = vadd.f32 0.0, %v1243
        %v1245 = vpop.f32.mrb[0].mxu0
        %1246 = vdwg.mxu0
        %v1247 = vmul.f32 %v1241, 0.35355338
        %v1248 = vmul.f32 %v1244, 0.35355338
        %v1249 = vadd.f32 %v1247, %v885
        %v1250 = vadd.f32 %v1248, %v886
        %v1251 = vsel %vm756, %v1249, -inf
        %1252 = vmax.xlane.f32.xlu0 %v1251
        %v1253 = vpop.xlane.xlu0 %1252
        %v1254 = vsel %vm756, %v1250, -inf
        %1255 = vmax.xlane.f32.xlu0 %v1254
        %v1256 = vpop.xlane.xlu0 %1255
        %v1257 = vsub.f32 %v1249, %v1253
        %v1258 = vsub.f32 %v1250, %v1256
        %v1259 = vmul.f32 %v1257, 1.442695
        %v1260 = vpow.pop %v1259
        %v1261 = vmul.f32 %v1258, 1.442695
        %v1262 = vpow.pop %v1261
        %v1263 = vsel %vm756, %v1260, 0.0
        %1264 = vadd.xlane.f32.xlu0 %v1263
        %v1265 = vpop.xlane.xlu0 %1264
        %v1266 = vsel %vm756, %v1262, 0.0
        %1267 = vadd.xlane.f32.xlu0 %v1266
        %v1268 = vpop.xlane.xlu0 %1267
        %v1269 = vrcp.pop %v1265
        %v1270 = vrcp.pop %v1268
        %v1271 = vmul.f32 %v1260, %v1269
        %v1272 = vmul.f32 %v1262, %v1270
        %v1273 = vpack.c.bf16 %v1272, %v1271
        %1274 = vrot.lane.b32.xlu0 %v945, 48
        %v1275 = vpop.permute.xlu0 %1274
        %v1278 = vsel %vm756, %v1273, 0
        %1280 = vmatprep.subr.bf16.mxu0 0
        %1281 = vmatpush1.bf16.msra.mxu0 %v1275
        %1282 = vmatprep.subr.bf16.mxu0 0
        %1283 = vmatpush1.bf16.msra.mxu0 0
        %1284 = vmatprep.subr.bf16.mxu0 0
        %1285 = vmatpush1.bf16.msra.mxu0 0
        %1286 = vmatprep.subr.bf16.mxu0 0
        %1287 = vmatpush1.bf16.msra.mxu0 0
        %1288 = vmatprep.subr.bf16.mxu0 0
        %1289 = vmatpush1.bf16.msra.mxu0 0
        %1290 = vmatprep.subr.bf16.mxu0 0
        %1291 = vmatpush1.bf16.msra.mxu0 0
        %1292 = vmatprep.subr.bf16.mxu0 0
        %1293 = vmatpush1.bf16.msra.mxu0 0
        %1294 = vmatprep.subr.bf16.mxu0 0
        %1295 = vmatpush1.bf16.msra.mxu0 0
        %1296 = vmatprep.subr.bf16.mxu0 0
        %1297 = vmatpush1.bf16.msra.mxu0 0
        %1298 = vmatprep.subr.bf16.mxu0 0
        %1299 = vmatpush1.bf16.msra.mxu0 0
        %1300 = vmatprep.subr.bf16.mxu0 0
        %1301 = vmatpush1.bf16.msra.mxu0 0
        %1302 = vmatprep.subr.bf16.mxu0 0
        %1303 = vmatpush1.bf16.msra.mxu0 0
        %1304 = vmatprep.subr.bf16.mxu0 0
        %1305 = vmatpush1.bf16.msra.mxu0 0
        %1306 = vmatprep.subr.bf16.mxu0 0
        %1307 = vmatpush1.bf16.msra.mxu0 0
        %1308 = vmatprep.subr.bf16.mxu0 0
        %1309 = vmatpush1.bf16.msra.mxu0 0
        %1310 = vmatprep.subr.bf16.mxu0 0
        %1311 = vmatpush1.bf16.msra.mxu0 0
        %1312 = vmatprep.mubr.bf16.mxu0 0
        %1313 = vmatmul.mubr.bf16.gmra.mrb[0].mxu0 %v1278
        %v1314 = vpop.f32.mrb[0].mxu0
        %v1315 = vadd.f32 0.0, %v1314
        %v1316 = vpop.f32.mrb[0].mxu0
        %v1317 = vpop.f32.mrb[0].mxu0
        %v1318 = vadd.f32 0.0, %v1317
        %v1319 = vpop.f32.mrb[0].mxu0
        %1320 = vdwg.mxu0
        %1321 = vrot.lane.b32.xlu0 %v945, 104
        %v1322 = vpop.permute.xlu0 %1321
        %1323 = vrot.lane.b32.xlu0 %v945, 72
        %v1324 = vpop.permute.xlu0 %1323
        %v1326 = vsel %vm949, %v1322, 0
        %v1329 = vsel %vm949, %v1324, 0
        %1331 = vmatprep.subr.bf16.mxu0 0
        %1332 = vmatpush1.bf16.xpose.msra.mxu0 %v1329
        %1333 = vmatprep.subr.bf16.mxu0 0
        %1334 = vmatpush1.bf16.xpose.msra.mxu0 0
        %1335 = vmatprep.subr.bf16.mxu0 0
        %1336 = vmatpush1.bf16.xpose.msra.mxu0 0
        %1337 = vmatprep.subr.bf16.mxu0 0
        %1338 = vmatpush1.bf16.xpose.msra.mxu0 0
        %1339 = vmatprep.subr.bf16.mxu0 0
        %1340 = vmatpush1.bf16.xpose.msra.mxu0 0
        %1341 = vmatprep.subr.bf16.mxu0 0
        %1342 = vmatpush1.bf16.xpose.msra.mxu0 0
        %1343 = vmatprep.subr.bf16.mxu0 0
        %1344 = vmatpush1.bf16.xpose.msra.mxu0 0
        %1345 = vmatprep.subr.bf16.mxu0 0
        %1346 = vmatpush1.bf16.xpose.msra.mxu0 0
        %1347 = vmatprep.subr.bf16.mxu0 0
        %1348 = vmatpush1.bf16.xpose.msra.mxu0 0
        %1349 = vmatprep.subr.bf16.mxu0 0
        %1350 = vmatpush1.bf16.xpose.msra.mxu0 0
        %1351 = vmatprep.subr.bf16.mxu0 0
        %1352 = vmatpush1.bf16.xpose.msra.mxu0 0
        %1353 = vmatprep.subr.bf16.mxu0 0
        %1354 = vmatpush1.bf16.xpose.msra.mxu0 0
        %1355 = vmatprep.subr.bf16.mxu0 0
        %1356 = vmatpush1.bf16.xpose.msra.mxu0 0
        %1357 = vmatprep.subr.bf16.mxu0 0
        %1358 = vmatpush1.bf16.xpose.msra.mxu0 0
        %1359 = vmatprep.subr.bf16.mxu0 0
        %1360 = vmatpush1.bf16.xpose.msra.mxu0 0
        %1361 = vmatprep.subr.bf16.mxu0 0
        %1362 = vmatpush1.bf16.xpose.msra.mxu0 0
        %1363 = vmatprep.mubr.bf16.mxu0 0
        %1364 = vmatmul.mubr.bf16.gmra.mrb[0].mxu0 %v1326
        %v1365 = vpop.f32.mrb[0].mxu0
        %v1366 = vadd.f32 0.0, %v1365
        %v1367 = vpop.f32.mrb[0].mxu0
        %v1368 = vpop.f32.mrb[0].mxu0
        %v1369 = vadd.f32 0.0, %v1368
        %v1370 = vpop.f32.mrb[0].mxu0
        %1371 = vdwg.mxu0
        %v1372 = vmul.f32 %v1366, 0.35355338
        %v1373 = vmul.f32 %v1369, 0.35355338
        %v1374 = vadd.f32 %v1372, %v885
        %v1375 = vadd.f32 %v1373, %v886
        %v1376 = vsel %vm756, %v1374, -inf
        %1377 = vmax.xlane.f32.xlu0 %v1376
        %v1378 = vpop.xlane.xlu0 %1377
        %v1379 = vsel %vm756, %v1375, -inf
        %1380 = vmax.xlane.f32.xlu0 %v1379
        %v1381 = vpop.xlane.xlu0 %1380
        %v1382 = vsub.f32 %v1374, %v1378
        %v1383 = vsub.f32 %v1375, %v1381
        %v1384 = vmul.f32 %v1382, 1.442695
        %v1385 = vpow.pop %v1384
        %v1386 = vmul.f32 %v1383, 1.442695
        %v1387 = vpow.pop %v1386
        %v1388 = vsel %vm756, %v1385, 0.0
        %1389 = vadd.xlane.f32.xlu0 %v1388
        %v1390 = vpop.xlane.xlu0 %1389
        %v1391 = vsel %vm756, %v1387, 0.0
        %1392 = vadd.xlane.f32.xlu0 %v1391
        %v1393 = vpop.xlane.xlu0 %1392
        %v1394 = vrcp.pop %v1390
        %v1395 = vrcp.pop %v1393
        %v1396 = vmul.f32 %v1385, %v1394
        %v1397 = vmul.f32 %v1387, %v1395
        %v1398 = vpack.c.bf16 %v1397, %v1396
        %1399 = vrot.lane.b32.xlu0 %v945, 40
        %v1400 = vpop.permute.xlu0 %1399
        %v1403 = vsel %vm756, %v1398, 0
        %1405 = vmatprep.subr.bf16.mxu0 0
        %1406 = vmatpush1.bf16.msra.mxu0 %v1400
        %1407 = vmatprep.subr.bf16.mxu0 0
        %1408 = vmatpush1.bf16.msra.mxu0 0
        %1409 = vmatprep.subr.bf16.mxu0 0
        %1410 = vmatpush1.bf16.msra.mxu0 0
        %1411 = vmatprep.subr.bf16.mxu0 0
        %1412 = vmatpush1.bf16.msra.mxu0 0
        %1413 = vmatprep.subr.bf16.mxu0 0
        %1414 = vmatpush1.bf16.msra.mxu0 0
        %1415 = vmatprep.subr.bf16.mxu0 0
        %1416 = vmatpush1.bf16.msra.mxu0 0
        %1417 = vmatprep.subr.bf16.mxu0 0
        %1418 = vmatpush1.bf16.msra.mxu0 0
        %1419 = vmatprep.subr.bf16.mxu0 0
        %1420 = vmatpush1.bf16.msra.mxu0 0
        %1421 = vmatprep.subr.bf16.mxu0 0
        %1422 = vmatpush1.bf16.msra.mxu0 0
        %1423 = vmatprep.subr.bf16.mxu0 0
        %1424 = vmatpush1.bf16.msra.mxu0 0
        %1425 = vmatprep.subr.bf16.mxu0 0
        %1426 = vmatpush1.bf16.msra.mxu0 0
        %1427 = vmatprep.subr.bf16.mxu0 0
        %1428 = vmatpush1.bf16.msra.mxu0 0
        %1429 = vmatprep.subr.bf16.mxu0 0
        %1430 = vmatpush1.bf16.msra.mxu0 0
        %1431 = vmatprep.subr.bf16.mxu0 0
        %1432 = vmatpush1.bf16.msra.mxu0 0
        %1433 = vmatprep.subr.bf16.mxu0 0
        %1434 = vmatpush1.bf16.msra.mxu0 0
        %1435 = vmatprep.subr.bf16.mxu0 0
        %1436 = vmatpush1.bf16.msra.mxu0 0
        %1437 = vmatprep.mubr.bf16.mxu0 0
        %1438 = vmatmul.mubr.bf16.gmra.mrb[0].mxu0 %v1403
        %v1439 = vpop.f32.mrb[0].mxu0
        %v1440 = vadd.f32 0.0, %v1439
        %v1441 = vpop.f32.mrb[0].mxu0
        %v1442 = vpop.f32.mrb[0].mxu0
        %v1443 = vadd.f32 0.0, %v1442
        %v1444 = vpop.f32.mrb[0].mxu0
        %1445 = vdwg.mxu0
        %1448 = vrot.lane.b32.xlu0 %v1190, 8
        %v1449 = vpop.permute.xlu0 %1448
        %1450 = vrot.lane.b32.xlu0 %v1193, 8
        %v1451 = vpop.permute.xlu0 %1450
        %1456 = vrot.lane.b32.xlu0 %v1315, 16
        %v1457 = vpop.permute.xlu0 %1456
        %1458 = vrot.lane.b32.xlu0 %v1318, 16
        %v1459 = vpop.permute.xlu0 %1458
        %1464 = vrot.lane.b32.xlu0 %v1440, 24
        %v1465 = vpop.permute.xlu0 %1464
        %1466 = vrot.lane.b32.xlu0 %v1443, 24
        %v1467 = vpop.permute.xlu0 %1466
        %v1470 = vsel %vm949, %v1065, %v1449
        %v1471 = vsel %vm949, %v1068, %v1451
        %v1472 = vsel %vm756, %v1470, %v1457
        %v1473 = vsel %vm756, %v1471, %v1459
        %vm1474 = vcmask 195584
        %v1475 = vsel %vm1474, %v1472, %v1465
        %v1476 = vsel %vm1474, %v1473, %v1467
        %v1477 = vld [vmem:[%s9] sm:$0xff]
        %v1478 = vld [vmem:[%s9 + $0x8] sm:$0xff]
        %v1479 = vld [vmem:[%s9 + $0x10] sm:$0xff]
        %v1480 = vld [vmem:[%s9 + $0x18] sm:$0xff]
        %v1481 = vpack.c.bf16 %v1476, %v1475
        %v1482 = vpack.c.bf16 %v1478, %v1477
        %v1483 = vpack.c.bf16 %v1480, %v1479
        %v1484 = vld [vmem:[%s10] sm:$0x1]
        %v1486 = vlaneseq
        %v1487 = vshrl.u32 %v1486, 7
        %v1488 = vsub.s32 0, %v1487
        %v1489 = vrot.slane %v1484, %v1488
        %v1492 = vsel %vm839, %v1481, 0
        %1494 = vmatprep.subr.bf16.mxu0 0
        %1495 = vmatpush1.bf16.msra.mxu0 %v1482
        %1496 = vmatprep.subr.bf16.mxu0 0
        %1497 = vmatpush1.bf16.msra.mxu0 %v1483
        %1498 = vmatprep.subr.bf16.mxu0 0
        %1499 = vmatpush1.bf16.msra.mxu0 0
        %1500 = vmatprep.subr.bf16.mxu0 0
        %1501 = vmatpush1.bf16.msra.mxu0 0
        %1502 = vmatprep.subr.bf16.mxu0 0
        %1503 = vmatpush1.bf16.msra.mxu0 0
        %1504 = vmatprep.subr.bf16.mxu0 0
        %1505 = vmatpush1.bf16.msra.mxu0 0
        %1506 = vmatprep.subr.bf16.mxu0 0
        %1507 = vmatpush1.bf16.msra.mxu0 0
        %1508 = vmatprep.subr.bf16.mxu0 0
        %1509 = vmatpush1.bf16.msra.mxu0 0
        %1510 = vmatprep.subr.bf16.mxu0 0
        %1511 = vmatpush1.bf16.msra.mxu0 0
        %1512 = vmatprep.subr.bf16.mxu0 0
        %1513 = vmatpush1.bf16.msra.mxu0 0
        %1514 = vmatprep.subr.bf16.mxu0 0
        %1515 = vmatpush1.bf16.msra.mxu0 0
        %1516 = vmatprep.subr.bf16.mxu0 0
        %1517 = vmatpush1.bf16.msra.mxu0 0
        %1518 = vmatprep.subr.bf16.mxu0 0
        %1519 = vmatpush1.bf16.msra.mxu0 0
        %1520 = vmatprep.subr.bf16.mxu0 0
        %1521 = vmatpush1.bf16.msra.mxu0 0
        %1522 = vmatprep.subr.bf16.mxu0 0
        %1523 = vmatpush1.bf16.msra.mxu0 0
        %1524 = vmatprep.subr.bf16.mxu0 0
        %1525 = vmatpush1.bf16.msra.mxu0 0
        %1526 = vmatprep.mubr.bf16.mxu0 0
        %1527 = vmatmul.mubr.bf16.gmra.mrb[0].mxu0 %v1492
        %v1528 = vpop.f32.mrb[0].mxu0
        %v1529 = vadd.f32 %v1489, %v1528
        %v1530 = vpop.f32.mrb[0].mxu0
        %v1531 = vpop.f32.mrb[0].mxu0
        %v1532 = vadd.f32 %v1489, %v1531
        %v1533 = vpop.f32.mrb[0].mxu0
        %1534 = vdwg.mxu0
        %v1535 = vadd.f32 %v881, %v1529
        %v1536 = vadd.f32 %v882, %v1532
        %v1537 = vld [vmem:[%s11] sm:$0x1]
        %v1538 = vld [vmem:[%s12] sm:$0x1]
        %v1539 = vsel %vm839, %v1535, 0.0
        %1540 = vadd.xlane.f32.xlu0 %v1539
        %v1541 = vpop.xlane.xlu0 %1540
        %v1542 = vsel %vm839, %v1536, 0.0
        %1543 = vadd.xlane.f32.xlu0 %v1542
        %v1544 = vpop.xlane.xlu0 %1543
        %v1545 = vmul.f32 %v1541, %v846
        %v1546 = vmul.f32 %v1544, %v846
        %v1547 = vsub.f32 %v1535, %v1545
        %v1548 = vsub.f32 %v1536, %v1546
        %v1549 = vmul.f32 %v1547, %v1547
        %v1550 = vmul.f32 %v1548, %v1548
        %v1551 = vsel %vm839, %v1549, 0.0
        %1552 = vadd.xlane.f32.xlu0 %v1551
        %v1553 = vpop.xlane.xlu0 %1552
        %v1554 = vsel %vm839, %v1550, 0.0
        %1555 = vadd.xlane.f32.xlu0 %v1554
        %v1556 = vpop.xlane.xlu0 %1555
        %v1557 = vmul.f32 %v1553, %v846
        %v1558 = vmul.f32 %v1556, %v846
        %v1559 = vadd.f32 %v1557, 1e-05
        %v1560 = vadd.f32 %v1558, 1e-05
        %v1561 = vrsqrt.pop %v1559
        %v1562 = vrsqrt.pop %v1560
        %v1563 = vmul.f32 %v1547, %v1561
        %v1564 = vmul.f32 %v1548, %v1562
        %v1566 = vlaneseq
        %v1567 = vshrl.u32 %v1566, 7
        %v1568 = vsub.s32 0, %v1567
        %v1569 = vrot.slane %v1537, %v1568
        %v1571 = vmul.f32 %v1563, %v1569
        %v1572 = vmul.f32 %v1564, %v1569
        %v1574 = vlaneseq
        %v1575 = vshrl.u32 %v1574, 7
        %v1576 = vsub.s32 0, %v1575
        %v1577 = vrot.slane %v1538, %v1576
        %v1579 = vadd.f32 %v1571, %v1577
        %v1580 = vadd.f32 %v1572, %v1577
        %v1581 = vld [vmem:[%s13] sm:$0xff]
        %v1582 = vld [vmem:[%s13 + $0x8] sm:$0xff]
        %v1583 = vld [vmem:[%s13 + $0x10] sm:$0xff]
        %v1584 = vld [vmem:[%s13 + $0x18] sm:$0xff]
        %v1585 = vpack.c.bf16 %v1580, %v1579
        %v1586 = vpack.c.bf16 %v1582, %v1581
        %v1587 = vpack.c.bf16 %v1584, %v1583
        %v1588 = vld [vmem:[%s14] sm:$0x1]
        %v1590 = vlaneseq
        %v1591 = vshrl.u32 %v1590, 7
        %v1592 = vsub.s32 0, %v1591
        %v1593 = vrot.slane %v1588, %v1592
        %v1596 = vsel %vm839, %v1585, 0
        %1598 = vmatprep.subr.bf16.mxu0 0
        %1599 = vmatpush1.bf16.msra.mxu0 %v1586
        %1600 = vmatprep.subr.bf16.mxu0 0
        %1601 = vmatpush1.bf16.msra.mxu0 %v1587
        %1602 = vmatprep.subr.bf16.mxu0 0
        %1603 = vmatpush1.bf16.msra.mxu0 0
        %1604 = vmatprep.subr.bf16.mxu0 0
        %1605 = vmatpush1.bf16.msra.mxu0 0
        %1606 = vmatprep.subr.bf16.mxu0 0
        %1607 = vmatpush1.bf16.msra.mxu0 0
        %1608 = vmatprep.subr.bf16.mxu0 0
        %1609 = vmatpush1.bf16.msra.mxu0 0
        %1610 = vmatprep.subr.bf16.mxu0 0
        %1611 = vmatpush1.bf16.msra.mxu0 0
        %1612 = vmatprep.subr.bf16.mxu0 0
        %1613 = vmatpush1.bf16.msra.mxu0 0
        %1614 = vmatprep.subr.bf16.mxu0 0
        %1615 = vmatpush1.bf16.msra.mxu0 0
        %1616 = vmatprep.subr.bf16.mxu0 0
        %1617 = vmatpush1.bf16.msra.mxu0 0
        %1618 = vmatprep.subr.bf16.mxu0 0
        %1619 = vmatpush1.bf16.msra.mxu0 0
        %1620 = vmatprep.subr.bf16.mxu0 0
        %1621 = vmatpush1.bf16.msra.mxu0 0
        %1622 = vmatprep.subr.bf16.mxu0 0
        %1623 = vmatpush1.bf16.msra.mxu0 0
        %1624 = vmatprep.subr.bf16.mxu0 0
        %1625 = vmatpush1.bf16.msra.mxu0 0
        %1626 = vmatprep.subr.bf16.mxu0 0
        %1627 = vmatpush1.bf16.msra.mxu0 0
        %1628 = vmatprep.subr.bf16.mxu0 0
        %1629 = vmatpush1.bf16.msra.mxu0 0
        %1630 = vmatprep.mubr.bf16.mxu0 0
        %1631 = vmatmul.mubr.bf16.gmra.mrb[0].mxu0 %v1596
        %v1632 = vpop.f32.mrb[0].mxu0
        %v1633 = vadd.f32 %v1593, %v1632
        %v1634 = vpop.f32.mrb[0].mxu0
        %v1635 = vpop.f32.mrb[0].mxu0
        %v1636 = vadd.f32 %v1593, %v1635
        %v1637 = vpop.f32.mrb[0].mxu0
        %1638 = vdwg.mxu0
        %v1639 = vmul.f32 %v1633, %v1633
        %v1640 = vmul.f32 %v1636, %v1636
        %v1641 = vmul.f32 %v1633, %v1639
        %v1642 = vmul.f32 %v1636, %v1640
        %v1643 = vmul.f32 %v1641, 0.044715
        %v1644 = vmul.f32 %v1642, 0.044715
        %v1645 = vadd.f32 %v1633, %v1643
        %v1646 = vadd.f32 %v1636, %v1644
        %v1647 = vmul.f32 %v1645, 0.7978846
        %v1648 = vmul.f32 %v1646, 0.7978846
        %v1649 = vtanh.pop %v1647
        %v1650 = vtanh.pop %v1648
        %v1651 = vadd.f32 %v1649, 1.0
        %v1652 = vadd.f32 %v1650, 1.0
        %v1653 = vmul.f32 %v1651, 0.5
        %v1654 = vmul.f32 %v1652, 0.5
        %v1655 = vmul.f32 %v1633, %v1653
        %v1656 = vmul.f32 %v1636, %v1654
        %v1657 = vld [vmem:[%s15] sm:$0xff]
        %v1658 = vld [vmem:[%s15 + $0x8] sm:$0xff]
        %v1659 = vld [vmem:[%s15 + $0x10] sm:$0xff]
        %v1660 = vld [vmem:[%s15 + $0x18] sm:$0xff]
        %v1661 = vld [vmem:[%s15 + $0x20] sm:$0xff]
        %v1662 = vld [vmem:[%s15 + $0x28] sm:$0xff]
        %v1663 = vld [vmem:[%s15 + $0x30] sm:$0xff]
        %v1664 = vld [vmem:[%s15 + $0x38] sm:$0xff]
        %v1665 = vpack.c.bf16 %v1656, %v1655
        %v1666 = vpack.c.bf16 %v1658, %v1657
        %v1667 = vpack.c.bf16 %v1660, %v1659
        %v1668 = vpack.c.bf16 %v1662, %v1661
        %v1669 = vpack.c.bf16 %v1664, %v1663
        %v1670 = vld [vmem:[%s16] sm:$0x1]
        %v1672 = vlaneseq
        %v1673 = vshrl.u32 %v1672, 7
        %v1674 = vsub.s32 0, %v1673
        %v1675 = vrot.slane %v1670, %v1674
        %vm1677 = vcmask 523264
        %v1679 = vsel %vm1677, %v1665, 0
        %1681 = vmatprep.subr.bf16.mxu0 0
        %1682 = vmatpush1.bf16.msra.mxu0 %v1666
        %1683 = vmatprep.subr.bf16.mxu0 0
        %1684 = vmatpush1.bf16.msra.mxu0 %v1667
        %1685 = vmatprep.subr.bf16.mxu0 0
        %1686 = vmatpush1.bf16.msra.mxu0 %v1668
        %1687 = vmatprep.subr.bf16.mxu0 0
        %1688 = vmatpush1.bf16.msra.mxu0 %v1669
        %1689 = vmatprep.subr.bf16.mxu0 0
        %1690 = vmatpush1.bf16.msra.mxu0 0
        %1691 = vmatprep.subr.bf16.mxu0 0
        %1692 = vmatpush1.bf16.msra.mxu0 0
        %1693 = vmatprep.subr.bf16.mxu0 0
        %1694 = vmatpush1.bf16.msra.mxu0 0
        %1695 = vmatprep.subr.bf16.mxu0 0
        %1696 = vmatpush1.bf16.msra.mxu0 0
        %1697 = vmatprep.subr.bf16.mxu0 0
        %1698 = vmatpush1.bf16.msra.mxu0 0
        %1699 = vmatprep.subr.bf16.mxu0 0
        %1700 = vmatpush1.bf16.msra.mxu0 0
        %1701 = vmatprep.subr.bf16.mxu0 0
        %1702 = vmatpush1.bf16.msra.mxu0 0
        %1703 = vmatprep.subr.bf16.mxu0 0
        %1704 = vmatpush1.bf16.msra.mxu0 0
        %1705 = vmatprep.subr.bf16.mxu0 0
        %1706 = vmatpush1.bf16.msra.mxu0 0
        %1707 = vmatprep.subr.bf16.mxu0 0
        %1708 = vmatpush1.bf16.msra.mxu0 0
        %1709 = vmatprep.subr.bf16.mxu0 0
        %1710 = vmatpush1.bf16.msra.mxu0 0
        %1711 = vmatprep.subr.bf16.mxu0 0
        %1712 = vmatpush1.bf16.msra.mxu0 0
        %1713 = vmatprep.mubr.bf16.mxu0 0
        %1714 = vmatmul.mubr.bf16.gmra.mrb[0].mxu0 %v1679
        %v1715 = vpop.f32.mrb[0].mxu0
        %v1716 = vadd.f32 %v1675, %v1715
        %v1717 = vpop.f32.mrb[0].mxu0
        %v1718 = vpop.f32.mrb[0].mxu0
        %v1719 = vpop.f32.mrb[0].mxu0
        %1720 = vdwg.mxu0
        %v1721 = vadd.f32 %v1579, %v1716
        %v1722 = vld [vmem:[%s17] sm:$0x1]
        %v1723 = vld [vmem:[%s18] sm:$0x1]
        %v1724 = vsel %vm839, %v1721, 0.0
        %1725 = vadd.xlane.f32.xlu0 %v1724
        %v1726 = vpop.xlane.xlu0 %1725
        %v1727 = vmul.f32 %v1726, %v846
        %v1728 = vsub.f32 %v1721, %v1727
        %v1729 = vmul.f32 %v1728, %v1728
        %v1730 = vsel %vm839, %v1729, 0.0
        %1731 = vadd.xlane.f32.xlu0 %v1730
        %v1732 = vpop.xlane.xlu0 %1731
        %v1733 = vmul.f32 %v1732, %v846
        %v1734 = vadd.f32 %v1733, 1e-05
        %v1735 = vrsqrt.pop %v1734
        %v1736 = vmul.f32 %v1728, %v1735
        %v1738 = vlaneseq
        %v1739 = vshrl.u32 %v1738, 7
        %v1740 = vsub.s32 0, %v1739
        %v1741 = vrot.slane %v1722, %v1740
        %v1743 = vmul.f32 %v1736, %v1741
        %v1745 = vlaneseq
        %v1746 = vshrl.u32 %v1745, 7
        %v1747 = vsub.s32 0, %v1746
        %v1748 = vrot.slane %v1723, %v1747
        %v1750 = vadd.f32 %v1743, %v1748
        %v1751 = vld [vmem:[%s19] sm:$0xff]
        %v1752 = vld [vmem:[%s19 + $0x8] sm:$0xff]
        %v1753 = vld [vmem:[%s19 + $0x10] sm:$0xff]
        %v1754 = vld [vmem:[%s19 + $0x18] sm:$0xff]
        %v1755 = vpack.c.bf16 %v1750, %v1750
        %v1756 = vpack.c.bf16 %v1752, %v1751
        %v1757 = vpack.c.bf16 %v1754, %v1753
        %v1758 = vld [vmem:[%s20] sm:$0x1]
        %v1760 = vsel %vm839, %v1755, 0
        %1762 = vmatprep.subr.bf16.mxu0 0
        %1763 = vmatpush1.bf16.msra.mxu0 %v1756
        %1764 = vmatprep.subr.bf16.mxu0 0
        %1765 = vmatpush1.bf16.msra.mxu0 %v1757
        %1766 = vmatprep.subr.bf16.mxu0 0
        %1767 = vmatpush1.bf16.msra.mxu0 0
        %1768 = vmatprep.subr.bf16.mxu0 0
        %1769 = vmatpush1.bf16.msra.mxu0 0
        %1770 = vmatprep.subr.bf16.mxu0 0
        %1771 = vmatpush1.bf16.msra.mxu0 0
        %1772 = vmatprep.subr.bf16.mxu0 0
        %1773 = vmatpush1.bf16.msra.mxu0 0
        %1774 = vmatprep.subr.bf16.mxu0 0
        %1775 = vmatpush1.bf16.msra.mxu0 0
        %1776 = vmatprep.subr.bf16.mxu0 0
        %1777 = vmatpush1.bf16.msra.mxu0 0
        %1778 = vmatprep.subr.bf16.mxu0 0
        %1779 = vmatpush1.bf16.msra.mxu0 0
        %1780 = vmatprep.subr.bf16.mxu0 0
        %1781 = vmatpush1.bf16.msra.mxu0 0
        %1782 = vmatprep.subr.bf16.mxu0 0
        %1783 = vmatpush1.bf16.msra.mxu0 0
        %1784 = vmatprep.subr.bf16.mxu0 0
        %1785 = vmatpush1.bf16.msra.mxu0 0
        %1786 = vmatprep.subr.bf16.mxu0 0
        %1787 = vmatpush1.bf16.msra.mxu0 0
        %1788 = vmatprep.subr.bf16.mxu0 0
        %1789 = vmatpush1.bf16.msra.mxu0 0
        %1790 = vmatprep.subr.bf16.mxu0 0
        %1791 = vmatpush1.bf16.msra.mxu0 0
        %1792 = vmatprep.subr.bf16.mxu0 0
        %1793 = vmatpush1.bf16.msra.mxu0 0
        %1794 = vmatprep.mubr.bf16.mxu0 0
        %1795 = vmatmul.mubr.bf16.gmra.mrb[0].mxu0 %v1760
        %v1796 = vpop.f32.mrb[0].mxu0
        %v1797 = vadd.f32 %v1758, %v1796
        %v1798 = vpop.f32.mrb[0].mxu0
        %v1799 = vpop.f32.mrb[0].mxu0
        %v1800 = vpop.f32.mrb[0].mxu0
        %1801 = vdwg.mxu0
        %v1802 = vtanh.pop %v1797
        %vm1803 = vcmask 253952
        %1804 = vst.msk [vmem:[%s704] sm:$0x1] %vm1803, %v1802
        %s1805 = sand.u32 %s509, 1
        %s1806 = scalar_lea.sflag [#allocation3], %s1805
        %s1807 = sand.u32 %s509, 1
        %s1808 = scalar_lea.vmem [#allocation2], %s1807
        // Predicated region
        $region105: #{discriminator_gcb_forward.1} parent=103 // pred_check
          %p1809 = pneg %p519
        $region106: #{discriminator_gcb_forward.1} parent=103 // pred_check_branch
          %1811 = sbr.rel (%p1809) target = $region108
        $region107: #{discriminator_gcb_forward.1} parent=103 // pred_region
          %s1813 = ssub.s32 16, 16
          %1814 = vsyncadd %s1806, %s1813
          %s1815 = smul.addr %s35, 16
          %s1816 = scalar_lea.hbm %s21, %s1815
          %s1818 = sshll.u32 %s1808, 4
          %s1819 = int_to_ptr.vmem [resolvable:$true] %s1818
          %1821 = dma.vmem_to_hbm [thread:$0]  %s1819, 16, %s1816, %s1806
        $region108: #{discriminator_gcb_forward.1} parent=103 // pred_fallthru
          _
      $region104: #{discriminator_gcb_forward.1} parent=5 // pred_fallthru
        _
      %p1822 = scmp.le.s32.totalorder 2, %s30
      // Predicated region
      $region109: #{discriminator_gcb_forward.1} parent=5 // pred_check
        %p1823 = pneg %p1822
      $region110: #{discriminator_gcb_forward.1} parent=5 // pred_check_branch
        %1825 = sbr.rel (%p1823) target = $region112
      $region111: #{discriminator_gcb_forward.1} parent=5 // pred_region
        %s1826 = ssub.s32 %s30, 2
        // Predicated region
        $region113: #{discriminator_gcb_forward.1} parent=111 // pred_check
          %p1827 = pneg %p525
        $region114: #{discriminator_gcb_forward.1} parent=111 // pred_check_branch
          %1829 = sbr.rel (%p1827) target = $region116
        $region115: #{discriminator_gcb_forward.1} parent=111 // pred_region
          %s1830 = sand.u32 %s510, 1
          %s1831 = scalar_lea.sflag [#allocation3], %s1830
          %s1832 = sand.u32 %s510, 1
          %s1833 = scalar_lea.vmem [#allocation2], %s1832
          %1834 = dma.done %s1831, 16
        $region116: #{discriminator_gcb_forward.1} parent=111 // pred_fallthru
          _
      $region112: #{discriminator_gcb_forward.1} parent=5 // pred_fallthru
        _
    $region6: #{discriminator_gcb_forward.1} parent=1 // loop_footer
      %s34 = sadd.s32 1, %s30
    $region7: #{discriminator_gcb_forward.1} parent=1 // loop_footer_branch
      %29 = sbr.rel target = $region3
    $region8: #{discriminator_gcb_forward.1} parent=1 // loop_exit
      _
    %1835 = vsyncpa [#allocation3], 1
    %s1836 = scalar_lea.sflag [#allocation3], 1
    %1837 = vsyncpa %s1836, 1

</llo_original>
